<compile_context>
chip_gen: v7x
topology: tpu7x:2x2x1
jax: 0.10.0
libtpu: 0.0.40
codegen_flags: <defaults>
</compile_context>

<pallas_src>
import numpy as np
import jax
import jax.numpy as jnp
from jax.experimental import pallas as pl
from jax.experimental.pallas import tpu as pltpu

N_QUBITS = 9
Q_DEPTH = 6
Q_DELTA = 0.01
BATCH = 32                  # hard-coded by the module's forward (reshape(32, 54))
IN_FEATS = 6 * N_QUBITS     # 54
DIM = 2 ** N_QUBITS         # 512
COL_BLK = 128               # unitary column block streamed per grid step
N_BLKS = DIM // COL_BLK     # 4


# ----------------------------------------------------------------------------
# Host-side (numpy, float64) parameter setup: build the fixed part of the
# circuit (entangling + trained RY layers) as one real 512x512 matrix, plus the
# PauliZ-sign table. All gates are real, so no complex math is needed.
# ----------------------------------------------------------------------------
def _ry(theta):
    c, s = np.cos(theta / 2.0), np.sin(theta / 2.0)
    return np.array([[c, -s], [s, c]], dtype=np.float64)


def _ry_layer(angles):
    m = np.array([[1.0]], dtype=np.float64)
    for t in angles:                       # wire 0 is the most-significant qubit
        m = np.kron(m, _ry(t))
    return m


def _entangling_layer():
    # CNOT(0,1) CNOT(2,3) CNOT(4,5) CNOT(6,7) then CNOT(1,2) CNOT(3,4) CNOT(5,6) CNOT(7,8)
    perm = np.zeros(DIM, dtype=np.int64)
    for b in range(DIM):
        bits = [(b >> (N_QUBITS - 1 - w)) & 1 for w in range(N_QUBITS)]
        for c in range(0, N_QUBITS - 1, 2):
            if bits[c]:
                bits[c + 1] ^= 1
        for c in range(1, N_QUBITS - 1, 2):
            if bits[c]:
                bits[c + 1] ^= 1
        bp = 0
        for w in range(N_QUBITS):
            bp = (bp << 1) | bits[w]
        perm[b] = bp
    e = np.zeros((DIM, DIM), dtype=np.float64)
    e[perm, np.arange(DIM)] = 1.0
    return e


def build_circuit_unitary(q_params_flat):
    qw = np.asarray(q_params_flat, dtype=np.float64).reshape(Q_DEPTH, N_QUBITS)
    ent = _entangling_layer()
    u = np.eye(DIM, dtype=np.float64)
    for k in range(Q_DEPTH):               # each layer: entangle, then RY(q_weights[k])
        u = _ry_layer(qw[k]) @ ent @ u
    return u                               # (512, 512) real


def build_bit_tables():
    bits = np.zeros((N_QUBITS, DIM), dtype=np.float64)
    for w in range(N_QUBITS):
        for b in range(DIM):
            bits[w, b] = (b >> (N_QUBITS - 1 - w)) & 1
    zsign = (1.0 - 2.0 * bits.T)                       # (512, 9): <Z_w> signs per basis state
    return bits, zsign


def build_params(w_pre, b_pre, q_params, w_post, b_post):
    """Fuse what can be fused on the host; everything the kernel needs."""
    u = build_circuit_unitary(np.asarray(q_params, np.float64))
    _, zsign = build_bit_tables()

    # pre_net bias folded into the weight; stored (9, 55) so the 9-wide dim is
    # the sublane (not the 128-lane) axis -> minimal padding in HBM/VMEM.
    wpre_t = np.concatenate(
        [np.asarray(w_pre, np.float32),
         np.asarray(b_pre, np.float32)[:, None]], axis=1)            # (9, 55)

    # post_net folded into the PauliZ projection (bias folds exactly because the
    # probabilities sum to 1 per row), stored transposed (9, 512).
    zpost_t = (np.asarray(w_post, np.float64) @ zsign.T
               + np.asarray(b_post, np.float64)[:, None])            # (9, 512)

    return {
        'wpre_t': jnp.asarray(wpre_t, dtype=jnp.float32),            # (9, 55)
        'u_t': jnp.asarray(u.T, dtype=jnp.bfloat16),                 # (512, 512) bf16
        'zpost_t': jnp.asarray(zpost_t, dtype=jnp.float32),          # (9, 512)
    }


# ----------------------------------------------------------------------------
# Pallas kernel.
#   grid step j streams u_t columns [128j : 128j+128) and the matching zpost
#   block; step 0 additionally runs pre_net + tanh, builds the 512-dim product
#   state (H + RY(data)) in FMA form from an in-kernel iota bit table, stashes
#   it as bf16 scratch, and zeros the (32, 9) accumulator output.
# ----------------------------------------------------------------------------
def _dressed_qnet_kernel(x_ref, wpre_ref, u_ref, zpost_ref, o_ref, state_sc):
    j = pl.program_id(0)

    @pl.when(j == 0)
    def _():
        # pre_net (bias fused via the ones column) + tanh * pi/2.
        pre = jax.lax.dot_general(
            x_ref[...], wpre_ref[...],
            dimension_numbers=(((1,), (1,)), ((), ())),
            preferred_element_type=jnp.float32)                      # (32, 9)
        q_in = jnp.tanh(pre) * np.float32(np.pi / 2.0)

        half = q_in * np.float32(0.5)
        c = jnp.cos(half)
        s = jnp.sin(half)
        amp0 = (c - s) * np.float32(1.0 / np.sqrt(2.0))  # amplitude on |0> of RY(th) H |0>
        d = s * np.float32(np.sqrt(2.0))                 # amp1 - amp0

        # Bit table generated in-kernel (no DMA): bit_w(basis) via shift/mask.
        col = jax.lax.broadcasted_iota(jnp.int32, (1, DIM), 1)       # (1, 512)
        bit = ((col >> (N_QUBITS - 1)) & 1).astype(jnp.float32)
        state = amp0[:, 0:1] + d[:, 0:1] * bit                       # (32, 512)
        for w in range(1, N_QUBITS):                    # statically unrolled FMA passes
            bit = ((col >> (N_QUBITS - 1 - w)) & 1).astype(jnp.float32)
            state = state * (amp0[:, w:w + 1] + d[:, w:w + 1] * bit)

        state_sc[...] = state.astype(jnp.bfloat16)       # bf16 MXU operand, all steps
        o_ref[...] = jnp.zeros_like(o_ref)

    # Statevector evolution for this 128-column block: bf16 operands, f32 acc.
    psi = jnp.dot(state_sc[...], u_ref[...],
                  preferred_element_type=jnp.float32)                # (32, 128)
    probs = psi * psi                                    # real circuit -> |amp|^2

    # <Z_w> + post_net in one contraction (zpost_t = W_post @ zsign^T + b_post).
    o_ref[...] += jax.lax.dot_general(
        probs, zpost_ref[...],
        dimension_numbers=(((1,), (1,)), ((), ())),
        preferred_element_type=jnp.float32)                          # (32, 9)


def quantum_sentence_transformer_forward(x, params):
    x2 = x.reshape(BATCH, IN_FEATS).astype(jnp.float32)
    x_aug = jnp.concatenate([x2, jnp.ones((BATCH, 1), jnp.float32)], axis=1)   # (32, 55)
    return pl.pallas_call(
        _dressed_qnet_kernel,
        out_shape=jax.ShapeDtypeStruct((BATCH, N_QUBITS), jnp.float32),
        grid=(N_BLKS,),
        in_specs=[
            pl.BlockSpec((BATCH, IN_FEATS + 1), lambda j: (0, 0)),     # x_aug (32, 55)
            pl.BlockSpec((N_QUBITS, IN_FEATS + 1), lambda j: (0, 0)),  # wpre_t (9, 55)
            pl.BlockSpec((DIM, COL_BLK), lambda j: (0, j)),            # u_t column block
            pl.BlockSpec((N_QUBITS, COL_BLK), lambda j: (0, j)),       # zpost_t column block
        ],
        out_specs=pl.BlockSpec((BATCH, N_QUBITS), lambda j: (0, 0)),   # VMEM-resident acc
        scratch_shapes=[pltpu.VMEM((BATCH, DIM), jnp.bfloat16)],       # statevector
        compiler_params=pltpu.CompilerParams(dimension_semantics=("arbitrary",)),
    )(x_aug, params['wpre_t'], params['u_t'], params['zpost_t'])


# ----------------------------------------------------------------------------
# Pure float64 reference (unfused, mirrors the torch module) for validation.
# ----------------------------------------------------------------------------
def reference_forward(x, w_pre, b_pre, q_params, w_post, b_post):
    x2 = np.asarray(x, np.float64).reshape(BATCH, IN_FEATS)
    pre = x2 @ np.asarray(w_pre, np.float64).T + np.asarray(b_pre, np.float64)
    q_in = np.tanh(pre) * np.pi / 2.0
    c = np.cos(q_in / 2.0)
    s = np.sin(q_in / 2.0)
    amp0 = (c - s) / np.sqrt(2.0)
    amp1 = (c + s) / np.sqrt(2.0)
    bits, zsign = build_bit_tables()
    state = np.ones((BATCH, DIM), dtype=np.float64)
    for w in range(N_QUBITS):
        bit = bits[w][None, :]
        state = state * (amp0[:, w:w + 1] * (1.0 - bit) + amp1[:, w:w + 1] * bit)
    u = build_circuit_unitary(np.asarray(q_params, np.float64))
    psi = state @ u.T
    probs = psi * psi
    q_out = probs @ zsign
    return q_out @ np.asarray(w_post, np.float64).T + np.asarray(b_post, np.float64)


if __name__ == "__main__":
    key = jax.random.PRNGKey(0)
    k1, k2, k3, k4, k5, k6 = jax.random.split(key, 6)

    # Deterministic synthetic parameters (shapes from the module __init__).
    w_pre = jax.random.normal(k1, (N_QUBITS, IN_FEATS), dtype=jnp.float32)      # pre_net.weight
    b_pre = 0.1 * jax.random.normal(k2, (N_QUBITS,), dtype=jnp.float32)         # pre_net.bias
    q_params = Q_DELTA * jax.random.normal(k3, (Q_DEPTH * N_QUBITS,), jnp.float32)
    w_post = jax.random.normal(k4, (N_QUBITS, N_QUBITS), dtype=jnp.float32) / np.sqrt(N_QUBITS)
    b_post = 0.1 * jax.random.normal(k5, (N_QUBITS,), dtype=jnp.float32)

    # Input: module forward requires exactly 32 * 54 elements.
    x = jax.random.normal(k6, (BATCH, 6, N_QUBITS), dtype=jnp.float32)

    params = build_params(w_pre, b_pre, q_params, w_post, b_post)

    out = quantum_sentence_transformer_forward(x, params)
    jax.block_until_ready(out)
    assert out.shape == (BATCH, N_QUBITS) and out.dtype == jnp.float32

    # Validate bf16-unitary numerics against the float64 reference.
    ref = reference_forward(np.asarray(x), np.asarray(w_pre), np.asarray(b_pre),
                            np.asarray(q_params), np.asarray(w_post), np.asarray(b_post))
    assert np.allclose(np.asarray(out, np.float64), ref, atol=5e-2, rtol=0.0), (
        "bf16 evolution drifted from f64 reference beyond tolerance")

    print("KERNEL_OK")
</pallas_src>

<mosaic_0001>
module attributes {stable_mosaic.version = 11 : i64} {
  func.func @_dressed_qnet_kernel(%arg0: i32, %arg1: memref<32x55xf32, #tpu.memory_space<vmem>>, %arg2: memref<9x55xf32, #tpu.memory_space<vmem>>, %arg3: memref<512x128xbf16, #tpu.memory_space<vmem>>, %arg4: memref<9x128xf32, #tpu.memory_space<vmem>>, %arg5: memref<32x9xf32, #tpu.memory_space<vmem>>, %arg6: memref<32x512xbf16, #tpu.memory_space<vmem>>) attributes {dimension_semantics = [#tpu.dimension_semantics<arbitrary>], iteration_bounds = array<i64: 4>, scalar_prefetch = 0 : i64, scratch_operands = 1 : i64, tpu.core_type = #tpu.core_type<tc>, window_params = [{pipeline_mode = #tpu.pipeline_mode<synchronous>, transform_indices = @transform_0, window_bounds = array<i64: 32, 55>}, {pipeline_mode = #tpu.pipeline_mode<synchronous>, transform_indices = @transform_1, window_bounds = array<i64: 9, 55>}, {transform_indices = @transform_2, window_bounds = array<i64: 512, 128>}, {transform_indices = @transform_3, window_bounds = array<i64: 9, 128>}, {pipeline_mode = #tpu.pipeline_mode<synchronous>, transform_indices = @transform_4, window_bounds = array<i64: 32, 9>}]} {
    %c0_i32 = arith.constant 0 : i32
    %0 = arith.cmpi eq, %arg0, %c0_i32 : i32
    %1 = arith.extui %0 : i1 to i32
    %c0_i32_0 = arith.constant 0 : i32
    %2 = arith.cmpi ne, %1, %c0_i32_0 : i32
    scf.if %2 {
      %c0_11 = arith.constant 0 : index
      %c0_12 = arith.constant 0 : index
      %12 = vector.load %arg1[%c0_11, %c0_12] : memref<32x55xf32, #tpu.memory_space<vmem>>, vector<32x55xf32>
      %c0_13 = arith.constant 0 : index
      %c0_14 = arith.constant 0 : index
      %13 = vector.load %arg2[%c0_13, %c0_14] : memref<9x55xf32, #tpu.memory_space<vmem>>, vector<9x55xf32>
      %cst_15 = arith.constant dense<0.000000e+00> : vector<32x9xf32>
      %14 = tpu.matmul %12, %13, %cst_15 {dimension_numbers = #tpu.dot_dimension_numbers<[1], [1], [0], [0], [0, 0, 1, 0], [], []>} : vector<32x55xf32>, vector<9x55xf32>, vector<32x9xf32> -> vector<32x9xf32>
      %15 = math.tanh %14 : vector<32x9xf32>
      %cst_16 = arith.constant 1.57079637 : f32
      %16 = vector.broadcast %cst_16 : f32 to vector<32x9xf32>
      %17 = arith.mulf %15, %16 : vector<32x9xf32>
      %cst_17 = arith.constant 5.000000e-01 : f32
      %18 = vector.broadcast %cst_17 : f32 to vector<32x9xf32>
      %19 = arith.mulf %17, %18 : vector<32x9xf32>
      %20 = math.cos %19 : vector<32x9xf32>
      %21 = math.sin %19 : vector<32x9xf32>
      %22 = arith.subf %20, %21 : vector<32x9xf32>
      %cst_18 = arith.constant 0.707106769 : f32
      %23 = vector.broadcast %cst_18 : f32 to vector<32x9xf32>
      %24 = arith.mulf %22, %23 : vector<32x9xf32>
      %cst_19 = arith.constant 1.41421354 : f32
      %25 = vector.broadcast %cst_19 : f32 to vector<32x9xf32>
      %26 = arith.mulf %21, %25 : vector<32x9xf32>
      %27 = tpu.iota {dimensions = array<i32: 1>} : vector<1x512xi32>
      %c8_i32 = arith.constant 8 : i32
      %28 = vector.broadcast %c8_i32 : i32 to vector<1x512xi32>
      %29 = arith.shrsi %27, %28 : vector<1x512xi32>
      %c1_i32 = arith.constant 1 : i32
      %30 = vector.broadcast %c1_i32 : i32 to vector<1x512xi32>
      %31 = arith.andi %29, %30 : vector<1x512xi32>
      %32 = arith.sitofp %31 : vector<1x512xi32> to vector<1x512xf32>
      %33 = vector.extract_strided_slice %24 {offsets = [0, 0], sizes = [32, 1], strides = [1, 1]} : vector<32x9xf32> to vector<32x1xf32>
      %34 = vector.extract_strided_slice %26 {offsets = [0, 0], sizes = [32, 1], strides = [1, 1]} : vector<32x9xf32> to vector<32x1xf32>
      %35 = vector.broadcast %34 : vector<32x1xf32> to vector<32x512xf32>
      %36 = vector.broadcast %32 : vector<1x512xf32> to vector<32x512xf32>
      %37 = arith.mulf %35, %36 : vector<32x512xf32>
      %38 = vector.broadcast %33 : vector<32x1xf32> to vector<32x512xf32>
      %39 = arith.addf %38, %37 : vector<32x512xf32>
      %c7_i32 = arith.constant 7 : i32
      %40 = vector.broadcast %c7_i32 : i32 to vector<1x512xi32>
      %41 = arith.shrsi %27, %40 : vector<1x512xi32>
      %c1_i32_20 = arith.constant 1 : i32
      %42 = vector.broadcast %c1_i32_20 : i32 to vector<1x512xi32>
      %43 = arith.andi %41, %42 : vector<1x512xi32>
      %44 = arith.sitofp %43 : vector<1x512xi32> to vector<1x512xf32>
      %45 = vector.extract_strided_slice %24 {offsets = [0, 1], sizes = [32, 1], strides = [1, 1]} : vector<32x9xf32> to vector<32x1xf32>
      %46 = vector.extract_strided_slice %26 {offsets = [0, 1], sizes = [32, 1], strides = [1, 1]} : vector<32x9xf32> to vector<32x1xf32>
      %47 = vector.broadcast %46 : vector<32x1xf32> to vector<32x512xf32>
      %48 = vector.broadcast %44 : vector<1x512xf32> to vector<32x512xf32>
      %49 = arith.mulf %47, %48 : vector<32x512xf32>
      %50 = vector.broadcast %45 : vector<32x1xf32> to vector<32x512xf32>
      %51 = arith.addf %50, %49 : vector<32x512xf32>
      %52 = arith.mulf %39, %51 : vector<32x512xf32>
      %c6_i32 = arith.constant 6 : i32
      %53 = vector.broadcast %c6_i32 : i32 to vector<1x512xi32>
      %54 = arith.shrsi %27, %53 : vector<1x512xi32>
      %c1_i32_21 = arith.constant 1 : i32
      %55 = vector.broadcast %c1_i32_21 : i32 to vector<1x512xi32>
      %56 = arith.andi %54, %55 : vector<1x512xi32>
      %57 = arith.sitofp %56 : vector<1x512xi32> to vector<1x512xf32>
      %58 = vector.extract_strided_slice %24 {offsets = [0, 2], sizes = [32, 1], strides = [1, 1]} : vector<32x9xf32> to vector<32x1xf32>
      %59 = vector.extract_strided_slice %26 {offsets = [0, 2], sizes = [32, 1], strides = [1, 1]} : vector<32x9xf32> to vector<32x1xf32>
      %60 = vector.broadcast %59 : vector<32x1xf32> to vector<32x512xf32>
      %61 = vector.broadcast %57 : vector<1x512xf32> to vector<32x512xf32>
      %62 = arith.mulf %60, %61 : vector<32x512xf32>
      %63 = vector.broadcast %58 : vector<32x1xf32> to vector<32x512xf32>
      %64 = arith.addf %63, %62 : vector<32x512xf32>
      %65 = arith.mulf %52, %64 : vector<32x512xf32>
      %c5_i32 = arith.constant 5 : i32
      %66 = vector.broadcast %c5_i32 : i32 to vector<1x512xi32>
      %67 = arith.shrsi %27, %66 : vector<1x512xi32>
      %c1_i32_22 = arith.constant 1 : i32
      %68 = vector.broadcast %c1_i32_22 : i32 to vector<1x512xi32>
      %69 = arith.andi %67, %68 : vector<1x512xi32>
      %70 = arith.sitofp %69 : vector<1x512xi32> to vector<1x512xf32>
      %71 = vector.extract_strided_slice %24 {offsets = [0, 3], sizes = [32, 1], strides = [1, 1]} : vector<32x9xf32> to vector<32x1xf32>
      %72 = vector.extract_strided_slice %26 {offsets = [0, 3], sizes = [32, 1], strides = [1, 1]} : vector<32x9xf32> to vector<32x1xf32>
      %73 = vector.broadcast %72 : vector<32x1xf32> to vector<32x512xf32>
      %74 = vector.broadcast %70 : vector<1x512xf32> to vector<32x512xf32>
      %75 = arith.mulf %73, %74 : vector<32x512xf32>
      %76 = vector.broadcast %71 : vector<32x1xf32> to vector<32x512xf32>
      %77 = arith.addf %76, %75 : vector<32x512xf32>
      %78 = arith.mulf %65, %77 : vector<32x512xf32>
      %c4_i32 = arith.constant 4 : i32
      %79 = vector.broadcast %c4_i32 : i32 to vector<1x512xi32>
      %80 = arith.shrsi %27, %79 : vector<1x512xi32>
      %c1_i32_23 = arith.constant 1 : i32
      %81 = vector.broadcast %c1_i32_23 : i32 to vector<1x512xi32>
      %82 = arith.andi %80, %81 : vector<1x512xi32>
      %83 = arith.sitofp %82 : vector<1x512xi32> to vector<1x512xf32>
      %84 = vector.extract_strided_slice %24 {offsets = [0, 4], sizes = [32, 1], strides = [1, 1]} : vector<32x9xf32> to vector<32x1xf32>
      %85 = vector.extract_strided_slice %26 {offsets = [0, 4], sizes = [32, 1], strides = [1, 1]} : vector<32x9xf32> to vector<32x1xf32>
      %86 = vector.broadcast %85 : vector<32x1xf32> to vector<32x512xf32>
      %87 = vector.broadcast %83 : vector<1x512xf32> to vector<32x512xf32>
      %88 = arith.mulf %86, %87 : vector<32x512xf32>
      %89 = vector.broadcast %84 : vector<32x1xf32> to vector<32x512xf32>
      %90 = arith.addf %89, %88 : vector<32x512xf32>
      %91 = arith.mulf %78, %90 : vector<32x512xf32>
      %c3_i32 = arith.constant 3 : i32
      %92 = vector.broadcast %c3_i32 : i32 to vector<1x512xi32>
      %93 = arith.shrsi %27, %92 : vector<1x512xi32>
      %c1_i32_24 = arith.constant 1 : i32
      %94 = vector.broadcast %c1_i32_24 : i32 to vector<1x512xi32>
      %95 = arith.andi %93, %94 : vector<1x512xi32>
      %96 = arith.sitofp %95 : vector<1x512xi32> to vector<1x512xf32>
      %97 = vector.extract_strided_slice %24 {offsets = [0, 5], sizes = [32, 1], strides = [1, 1]} : vector<32x9xf32> to vector<32x1xf32>
      %98 = vector.extract_strided_slice %26 {offsets = [0, 5], sizes = [32, 1], strides = [1, 1]} : vector<32x9xf32> to vector<32x1xf32>
      %99 = vector.broadcast %98 : vector<32x1xf32> to vector<32x512xf32>
      %100 = vector.broadcast %96 : vector<1x512xf32> to vector<32x512xf32>
      %101 = arith.mulf %99, %100 : vector<32x512xf32>
      %102 = vector.broadcast %97 : vector<32x1xf32> to vector<32x512xf32>
      %103 = arith.addf %102, %101 : vector<32x512xf32>
      %104 = arith.mulf %91, %103 : vector<32x512xf32>
      %c2_i32 = arith.constant 2 : i32
      %105 = vector.broadcast %c2_i32 : i32 to vector<1x512xi32>
      %106 = arith.shrsi %27, %105 : vector<1x512xi32>
      %c1_i32_25 = arith.constant 1 : i32
      %107 = vector.broadcast %c1_i32_25 : i32 to vector<1x512xi32>
      %108 = arith.andi %106, %107 : vector<1x512xi32>
      %109 = arith.sitofp %108 : vector<1x512xi32> to vector<1x512xf32>
      %110 = vector.extract_strided_slice %24 {offsets = [0, 6], sizes = [32, 1], strides = [1, 1]} : vector<32x9xf32> to vector<32x1xf32>
      %111 = vector.extract_strided_slice %26 {offsets = [0, 6], sizes = [32, 1], strides = [1, 1]} : vector<32x9xf32> to vector<32x1xf32>
      %112 = vector.broadcast %111 : vector<32x1xf32> to vector<32x512xf32>
      %113 = vector.broadcast %109 : vector<1x512xf32> to vector<32x512xf32>
      %114 = arith.mulf %112, %113 : vector<32x512xf32>
      %115 = vector.broadcast %110 : vector<32x1xf32> to vector<32x512xf32>
      %116 = arith.addf %115, %114 : vector<32x512xf32>
      %117 = arith.mulf %104, %116 : vector<32x512xf32>
      %c1_i32_26 = arith.constant 1 : i32
      %118 = vector.broadcast %c1_i32_26 : i32 to vector<1x512xi32>
      %119 = arith.shrsi %27, %118 : vector<1x512xi32>
      %c1_i32_27 = arith.constant 1 : i32
      %120 = vector.broadcast %c1_i32_27 : i32 to vector<1x512xi32>
      %121 = arith.andi %119, %120 : vector<1x512xi32>
      %122 = arith.sitofp %121 : vector<1x512xi32> to vector<1x512xf32>
      %123 = vector.extract_strided_slice %24 {offsets = [0, 7], sizes = [32, 1], strides = [1, 1]} : vector<32x9xf32> to vector<32x1xf32>
      %124 = vector.extract_strided_slice %26 {offsets = [0, 7], sizes = [32, 1], strides = [1, 1]} : vector<32x9xf32> to vector<32x1xf32>
      %125 = vector.broadcast %124 : vector<32x1xf32> to vector<32x512xf32>
      %126 = vector.broadcast %122 : vector<1x512xf32> to vector<32x512xf32>
      %127 = arith.mulf %125, %126 : vector<32x512xf32>
      %128 = vector.broadcast %123 : vector<32x1xf32> to vector<32x512xf32>
      %129 = arith.addf %128, %127 : vector<32x512xf32>
      %130 = arith.mulf %117, %129 : vector<32x512xf32>
      %c0_i32_28 = arith.constant 0 : i32
      %131 = vector.broadcast %c0_i32_28 : i32 to vector<1x512xi32>
      %132 = arith.shrsi %27, %131 : vector<1x512xi32>
      %c1_i32_29 = arith.constant 1 : i32
      %133 = vector.broadcast %c1_i32_29 : i32 to vector<1x512xi32>
      %134 = arith.andi %132, %133 : vector<1x512xi32>
      %135 = arith.sitofp %134 : vector<1x512xi32> to vector<1x512xf32>
      %136 = vector.extract_strided_slice %24 {offsets = [0, 8], sizes = [32, 1], strides = [1, 1]} : vector<32x9xf32> to vector<32x1xf32>
      %137 = vector.extract_strided_slice %26 {offsets = [0, 8], sizes = [32, 1], strides = [1, 1]} : vector<32x9xf32> to vector<32x1xf32>
      %138 = vector.broadcast %137 : vector<32x1xf32> to vector<32x512xf32>
      %139 = vector.broadcast %135 : vector<1x512xf32> to vector<32x512xf32>
      %140 = arith.mulf %138, %139 : vector<32x512xf32>
      %141 = vector.broadcast %136 : vector<32x1xf32> to vector<32x512xf32>
      %142 = arith.addf %141, %140 : vector<32x512xf32>
      %143 = arith.mulf %130, %142 : vector<32x512xf32>
      %144 = arith.truncf %143 : vector<32x512xf32> to vector<32x512xbf16>
      %c0_30 = arith.constant 0 : index
      %c0_31 = arith.constant 0 : index
      %145 = vector.load %arg6[%c0_30, %c0_31] : memref<32x512xbf16, #tpu.memory_space<vmem>>, vector<32x512xbf16>
      tpu.vector_store %arg6[%c0_30, %c0_31], %144 {strides = array<i32>} : memref<32x512xbf16, #tpu.memory_space<vmem>>, vector<32x512xbf16>,
      %cst_32 = arith.constant 0.000000e+00 : f32
      %146 = vector.broadcast %cst_32 : f32 to vector<32x9xf32>
      %c0_33 = arith.constant 0 : index
      %c0_34 = arith.constant 0 : index
      %147 = vector.load %arg5[%c0_33, %c0_34] : memref<32x9xf32, #tpu.memory_space<vmem>>, vector<32x9xf32>
      tpu.vector_store %arg5[%c0_33, %c0_34], %146 {strides = array<i32>} : memref<32x9xf32, #tpu.memory_space<vmem>>, vector<32x9xf32>,
    } else {
    }
    %c0 = arith.constant 0 : index
    %c0_1 = arith.constant 0 : index
    %3 = vector.load %arg6[%c0, %c0_1] : memref<32x512xbf16, #tpu.memory_space<vmem>>, vector<32x512xbf16>
    %c0_2 = arith.constant 0 : index
    %c0_3 = arith.constant 0 : index
    %4 = vector.load %arg3[%c0_2, %c0_3] : memref<512x128xbf16, #tpu.memory_space<vmem>>, vector<512x128xbf16>
    %cst = arith.constant dense<0.000000e+00> : vector<32x128xf32>
    %5 = tpu.matmul %3, %4, %cst {dimension_numbers = #tpu.dot_dimension_numbers<[1], [0], [0], [1], [0, 0, 1, 1], [], []>} : vector<32x512xbf16>, vector<512x128xbf16>, vector<32x128xf32> -> vector<32x128xf32>
    %6 = arith.mulf %5, %5 : vector<32x128xf32>
    %c0_4 = arith.constant 0 : index
    %c0_5 = arith.constant 0 : index
    %7 = vector.load %arg5[%c0_4, %c0_5] : memref<32x9xf32, #tpu.memory_space<vmem>>, vector<32x9xf32>
    %c0_6 = arith.constant 0 : index
    %c0_7 = arith.constant 0 : index
    %8 = vector.load %arg4[%c0_6, %c0_7] : memref<9x128xf32, #tpu.memory_space<vmem>>, vector<9x128xf32>
    %cst_8 = arith.constant dense<0.000000e+00> : vector<32x9xf32>
    %9 = tpu.matmul %6, %8, %cst_8 {dimension_numbers = #tpu.dot_dimension_numbers<[1], [1], [0], [0], [0, 0, 1, 0], [], []>} : vector<32x128xf32>, vector<9x128xf32>, vector<32x9xf32> -> vector<32x9xf32>
    %10 = arith.addf %7, %9 : vector<32x9xf32>
    %c0_9 = arith.constant 0 : index
    %c0_10 = arith.constant 0 : index
    %11 = vector.load %arg5[%c0_9, %c0_10] : memref<32x9xf32, #tpu.memory_space<vmem>>, vector<32x9xf32>
    tpu.vector_store %arg5[%c0_9, %c0_10], %10 {strides = array<i32>} : memref<32x9xf32, #tpu.memory_space<vmem>>, vector<32x9xf32>,
    return
  }
  func.func @transform_0(%arg0: i32) -> (i32, i32) {
    %c0_i32 = arith.constant 0 : i32
    %c0_i32_0 = arith.constant 0 : i32
    %c0_i32_1 = arith.constant 0 : i32
    return %c0_i32, %c0_i32_0 : i32, i32
  }
  func.func @transform_1(%arg0: i32) -> (i32, i32) {
    %c0_i32 = arith.constant 0 : i32
    %c0_i32_0 = arith.constant 0 : i32
    %c0_i32_1 = arith.constant 0 : i32
    return %c0_i32, %c0_i32_0 : i32, i32
  }
  func.func @transform_2(%arg0: i32) -> (i32, i32) {
    %c0_i32 = arith.constant 0 : i32
    %c0_i32_0 = arith.constant 0 : i32
    return %c0_i32, %arg0 : i32, i32
  }
  func.func @transform_3(%arg0: i32) -> (i32, i32) {
    %c0_i32 = arith.constant 0 : i32
    %c0_i32_0 = arith.constant 0 : i32
    return %c0_i32, %arg0 : i32, i32
  }
  func.func @transform_4(%arg0: i32) -> (i32, i32) {
    %c0_i32 = arith.constant 0 : i32
    %c0_i32_0 = arith.constant 0 : i32
    %c0_i32_1 = arith.constant 0 : i32
    return %c0_i32, %c0_i32_0 : i32, i32
  }
}

</mosaic_0001>

<llo_original>
// kernel: tpu_custom_call.1
$region0: #{tpu_custom_call.1}
  #allocation0 [shape = 'u32[]', space=smem, size = 0x4, offset = 0x4, fixed_abs, tag = 'smem constant byte address 0x4 - core index']
  #allocation1 [shape = 'u32[144,128]{1,0:T(1,128)}', space=vmem, size = 0x12000, scoped, tag = 'internal scratch']
  #allocation2 [shape = 'bf16[32,512]{1,0:T(16,128)(2,1)}', space=vmem, size = 0x8000, scoped, tag = 'scratch operand']
  %s0 = inlined_call_operand.hbm [shape: f32[32,55], index: 0, kind: input, shape index: {}]
  %s1 = inlined_call_operand.hbm [shape: f32[9,55], index: 1, kind: input, shape index: {}]
  %s2 = inlined_call_operand.hbm [shape: bf16[512,512], index: 2, kind: input, shape index: {}]
  %s3 = inlined_call_operand.hbm [shape: f32[9,512], index: 3, kind: input, shape index: {}]
  %s4 = inlined_call_operand.vmem [shape: f32[32,9], index: 4, kind: output, shape index: {}]
  %s5 = sld [smem:[#allocation0]]
  $region69: #{tpu_custom_call.1} parent=0
    _
  %s7 = ssub.s32 1, %s5
  %s8 = scalar_select 0, %s7, %s5
  $region1: #{tpu_custom_call.1} parent=0
    #allocation3 [shape = 'u8[16384]{0}', space=vmem, size = 0x4000, scoped, tag = 'input window, operand 0, single buffered']
    #allocation4 [shape = 's32[2]{0}', space=sflag, size = 0x8, scoped, tag = 'scoped memory for tpu_custom_call.1']
    #allocation5 [shape = 'u8[8192]{0}', space=vmem, size = 0x2000, scoped, tag = 'input window, operand 1, single buffered']
    #allocation6 [shape = 's32[1]{0}', space=sflag, size = 0x4, scoped, tag = 'scoped memory for tpu_custom_call.1']
    #allocation7 [shape = 'u8[262144]{0}', space=vmem, size = 0x40000, scoped, tag = 'input window, operand 2']
    #allocation8 [shape = 'u8[16384]{0}', space=vmem, size = 0x4000, scoped, tag = 'input window, operand 3']
    %9 = vsyncpa [#allocation4], 0
    %10 = vsyncpa [#allocation6], 0
    loop: start=0, step=1, limit=6
    $region2: #{tpu_custom_call.1} parent=1 // loop_pre_header
      _
    $region3: #{tpu_custom_call.1} parent=1 // loop_header
      %s12 = sphi 0, %s16
      %p13 = scmp.ge.s32.totalorder %s12, 6
      %s20 = sphi 0, %s20
      %s22 = sphi 0, %s20
      %s23 = sphi 0, %s22
      %s37 = sphi 0, %s23
      %s41 = sphi 0, %s41
      %s43 = sphi 0, %s41
      %s44 = sphi 0, %s43
      %s58 = sphi 0, %s44
      %s64 = sphi 0, %s66
      %s67 = sphi 0, %s64
      %s68 = sphi 0, %s67
      %s84 = sphi 0, %s68
      %s90 = sphi 0, %s92
      %s93 = sphi 0, %s90
      %s94 = sphi 0, %s93
      %s110 = sphi 0, %s94
      %s114 = sphi 0, %s114
      %s116 = sphi 0, %s114
      %s117 = sphi 0, %s116
      %s131 = sphi 0, %s117
    $region4: #{tpu_custom_call.1} parent=1 // loop_header_branch
      %15 = sbr.rel (%p13) target = $region8
    $region5: #{tpu_custom_call.1} parent=1 // loop_body
      %s17 = ssub.s32 %s12, 1
      %s18 = ssub.s32 %s12, 2
      %s19 = sadd.s32 %s12, 1
      %s21 = sadd.s32 %s20, 1
      %p24 = scmp.eq.s32.totalorder %s12, 3
      %p25 = scmp.ne.s32.totalorder %s20, %s22
      %p26 = scmp.eq.s32.totalorder %s12, 0
      %p27 = por %p25, %p26
      %p28 = scmp.ne.s32.totalorder %s20, %s22
      %p29 = scmp.eq.s32.totalorder %s17, 3
      %p30 = por %p28, %p29
      %p31 = scmp.ne.s32.totalorder %s22, %s23
      %p32 = scmp.eq.s32.totalorder %s17, 0
      %p33 = por %p31, %p32
      %p34 = scmp.ne.s32.totalorder %s22, %s23
      %p35 = scmp.eq.s32.totalorder %s18, 3
      %p36 = por %p34, %p35
      %p38 = scmp.ne.s32.totalorder %s23, %s37
      %p39 = scmp.eq.s32.totalorder %s18, 0
      %p40 = por %p38, %p39
      %s42 = sadd.s32 %s41, 1
      %p45 = scmp.eq.s32.totalorder %s12, 3
      %p46 = scmp.ne.s32.totalorder %s41, %s43
      %p47 = scmp.eq.s32.totalorder %s12, 0
      %p48 = por %p46, %p47
      %p49 = scmp.ne.s32.totalorder %s41, %s43
      %p50 = scmp.eq.s32.totalorder %s17, 3
      %p51 = por %p49, %p50
      %p52 = scmp.ne.s32.totalorder %s43, %s44
      %p53 = scmp.eq.s32.totalorder %s17, 0
      %p54 = por %p52, %p53
      %p55 = scmp.ne.s32.totalorder %s43, %s44
      %p56 = scmp.eq.s32.totalorder %s18, 3
      %p57 = por %p55, %p56
      %p59 = scmp.ne.s32.totalorder %s44, %s58
      %p60 = scmp.eq.s32.totalorder %s18, 0
      %p61 = por %p59, %p60
      %s62 = ssub.s32 %s12, %s19
      %p63 = scmp.eq.s32.totalorder %s62, 0
      %s65 = sadd.s32 %s64, 1
      %s66 = scalar_select %p63, %s64, %s65
      %p69 = pneg %p63
      %p70 = scmp.eq.s32.totalorder %s12, 3
      %p71 = por %p69, %p70
      %p72 = scmp.ne.s32.totalorder %s64, %s67
      %p73 = scmp.eq.s32.totalorder %s12, 0
      %p74 = por %p72, %p73
      %p75 = scmp.ne.s32.totalorder %s64, %s67
      %p76 = scmp.eq.s32.totalorder %s17, 3
      %p77 = por %p75, %p76
      %p78 = scmp.ne.s32.totalorder %s67, %s68
      %p79 = scmp.eq.s32.totalorder %s17, 0
      %p80 = por %p78, %p79
      %p81 = scmp.ne.s32.totalorder %s67, %s68
      %p82 = scmp.eq.s32.totalorder %s18, 3
      %p83 = por %p81, %p82
      %p85 = scmp.ne.s32.totalorder %s68, %s84
      %p86 = scmp.eq.s32.totalorder %s18, 0
      %p87 = por %p85, %p86
      %s88 = ssub.s32 %s12, %s19
      %p89 = scmp.eq.s32.totalorder %s88, 0
      %s91 = sadd.s32 %s90, 1
      %s92 = scalar_select %p89, %s90, %s91
      %p95 = pneg %p89
      %p96 = scmp.eq.s32.totalorder %s12, 3
      %p97 = por %p95, %p96
      %p98 = scmp.ne.s32.totalorder %s90, %s93
      %p99 = scmp.eq.s32.totalorder %s12, 0
      %p100 = por %p98, %p99
      %p101 = scmp.ne.s32.totalorder %s90, %s93
      %p102 = scmp.eq.s32.totalorder %s17, 3
      %p103 = por %p101, %p102
      %p104 = scmp.ne.s32.totalorder %s93, %s94
      %p105 = scmp.eq.s32.totalorder %s17, 0
      %p106 = por %p104, %p105
      %p107 = scmp.ne.s32.totalorder %s93, %s94
      %p108 = scmp.eq.s32.totalorder %s18, 3
      %p109 = por %p107, %p108
      %p111 = scmp.ne.s32.totalorder %s94, %s110
      %p112 = scmp.eq.s32.totalorder %s18, 0
      %p113 = por %p111, %p112
      %s115 = sadd.s32 %s114, 1
      %p118 = scmp.eq.s32.totalorder %s12, 3
      %p119 = scmp.ne.s32.totalorder %s114, %s116
      %p120 = scmp.eq.s32.totalorder %s12, 0
      %p121 = por %p119, %p120
      %p122 = scmp.ne.s32.totalorder %s114, %s116
      %p123 = scmp.eq.s32.totalorder %s17, 3
      %p124 = por %p122, %p123
      %p125 = scmp.ne.s32.totalorder %s116, %s117
      %p126 = scmp.eq.s32.totalorder %s17, 0
      %p127 = por %p125, %p126
      %p128 = scmp.ne.s32.totalorder %s116, %s117
      %p129 = scmp.eq.s32.totalorder %s18, 3
      %p130 = por %p128, %p129
      %p132 = scmp.ne.s32.totalorder %s117, %s131
      %p133 = scmp.eq.s32.totalorder %s18, 0
      %p134 = por %p132, %p133
      %p135 = scmp.le.s32.totalorder 1, %s12
      %p136 = scmp.lt.s32.totalorder %s12, 5
      %p137 = pnand %p135, %p136
      %p138 = pneg %p137
      // Predicated region
      $region9: #{tpu_custom_call.1} parent=5 // pred_check
        _
      $region10: #{tpu_custom_call.1} parent=5 // pred_check_branch
        %140 = sbr.rel (%p137) target = $region12
      $region11: #{tpu_custom_call.1} parent=5 // pred_region
        %s141 = ssub.s32 %s12, 1
        // Predicated region
        $region13: #{tpu_custom_call.1} parent=11 // pred_check
          %p142 = pneg %p33
        $region14: #{tpu_custom_call.1} parent=11 // pred_check_branch
          %144 = sbr.rel (%p142) target = $region16
        $region15: #{tpu_custom_call.1} parent=11 // pred_region
          %s146 = ssub.s32 512, 512
          %147 = vsyncadd [#allocation4], %s146
          %s148 = sshll.u32 [#allocation3], 4
          %s149 = int_to_ptr.vmem [resolvable:$true] %s148
          %154 = dma.hbm_to_vmem [thread:$0]  %s0, 512, %s149, [#allocation4], 128, 128, 8
        $region16: #{tpu_custom_call.1} parent=11 // pred_fallthru
          _
        // Predicated region
        $region17: #{tpu_custom_call.1} parent=11 // pred_check
          %p155 = pneg %p54
        $region18: #{tpu_custom_call.1} parent=11 // pred_check_branch
          %157 = sbr.rel (%p155) target = $region20
        $region19: #{tpu_custom_call.1} parent=11 // pred_region
          %s159 = ssub.s32 256, 256
          %160 = vsyncadd [#allocation6], %s159
          %s161 = sshll.u32 [#allocation5], 4
          %s162 = int_to_ptr.vmem [resolvable:$true] %s161
          %167 = dma.hbm_to_vmem [thread:$0]  %s1, 256, %s162, [#allocation6], 128, 128, 8
        $region20: #{tpu_custom_call.1} parent=11 // pred_fallthru
          _
      $region12: #{tpu_custom_call.1} parent=5 // pred_fallthru
        _
      %p168 = scmp.lt.s32.totalorder %s12, 4
      // Predicated region
      $region21: #{tpu_custom_call.1} parent=5 // pred_check
        %p169 = pneg %p168
      $region22: #{tpu_custom_call.1} parent=5 // pred_check_branch
        %171 = sbr.rel (%p169) target = $region24
      $region23: #{tpu_custom_call.1} parent=5 // pred_region
        // Predicated region
        $region25: #{tpu_custom_call.1} parent=23 // pred_check
          %p172 = pneg %p74
        $region26: #{tpu_custom_call.1} parent=23 // pred_check_branch
          %174 = sbr.rel (%p172) target = $region28
        $region27: #{tpu_custom_call.1} parent=23 // pred_region
          %s175 = sand.u32 %s12, 1
          %s176 = scalar_lea.sflag [#allocation4], %s175
          %s177 = sand.u32 %s64, 1
          %s178 = smul.addr %s177, 256
          %s179 = scalar_lea.vmem [#allocation7], %s178
          %s181 = ssub.s32 4096, 4096
          %182 = vsyncadd %s176, %s181
          %s183 = smul.addr %s12, 64
          %s184 = scalar_lea.hbm %s2, %s183
          %s185 = sshll.u32 %s179, 4
          %s186 = int_to_ptr.vmem [resolvable:$true] %s185
          %191 = dma.hbm_to_vmem [thread:$0]  %s184, 4096, %s186, %s176, 256, 64, 4
        $region28: #{tpu_custom_call.1} parent=23 // pred_fallthru
          _
        // Predicated region
        $region29: #{tpu_custom_call.1} parent=23 // pred_check
          %p192 = pneg %p100
        $region30: #{tpu_custom_call.1} parent=23 // pred_check_branch
          %194 = sbr.rel (%p192) target = $region32
        $region31: #{tpu_custom_call.1} parent=23 // pred_region
          %s195 = sand.u32 %s12, 1
          %s196 = scalar_lea.sflag [#allocation4], %s195
          %s197 = sand.u32 %s90, 1
          %s198 = smul.addr %s197, 16
          %s199 = scalar_lea.vmem [#allocation8], %s198
          %s201 = ssub.s32 256, 256
          %202 = vsyncadd %s196, %s201
          %s203 = smul.addr %s12, 128
          %s204 = scalar_lea.hbm %s3, %s203
          %s205 = sshll.u32 %s199, 4
          %s206 = int_to_ptr.vmem [resolvable:$true] %s205
          %211 = dma.hbm_to_vmem [thread:$0]  %s204, 256, %s206, %s196, 512, 128, 8
        $region32: #{tpu_custom_call.1} parent=23 // pred_fallthru
          _
      $region24: #{tpu_custom_call.1} parent=5 // pred_fallthru
        _
      %p212 = scmp.le.s32.totalorder 1, %s12
      %p213 = scmp.lt.s32.totalorder %s12, 5
      %p214 = pnand %p212, %p213
      %p215 = pneg %p214
      // Predicated region
      $region33: #{tpu_custom_call.1} parent=5 // pred_check
        _
      $region34: #{tpu_custom_call.1} parent=5 // pred_check_branch
        %217 = sbr.rel (%p214) target = $region36
      $region35: #{tpu_custom_call.1} parent=5 // pred_region
        %s218 = ssub.s32 %s12, 1
        // Predicated region
        $region37: #{tpu_custom_call.1} parent=35 // pred_check
          %p219 = pneg %p33
        $region38: #{tpu_custom_call.1} parent=35 // pred_check_branch
          %221 = sbr.rel (%p219) target = $region40
        $region39: #{tpu_custom_call.1} parent=35 // pred_region
          %222 = dma.done [#allocation4], 512
        $region40: #{tpu_custom_call.1} parent=35 // pred_fallthru
          _
        // Predicated region
        $region41: #{tpu_custom_call.1} parent=35 // pred_check
          %p223 = pneg %p54
        $region42: #{tpu_custom_call.1} parent=35 // pred_check_branch
          %225 = sbr.rel (%p223) target = $region44
        $region43: #{tpu_custom_call.1} parent=35 // pred_region
          %226 = dma.done [#allocation6], 256
        $region44: #{tpu_custom_call.1} parent=35 // pred_fallthru
          _
        %s227 = sand.u32 %s17, 1
        %s228 = scalar_lea.sflag [#allocation4], %s227
        %s229 = sand.u32 %s67, 1
        %s230 = smul.addr %s229, 256
        %s231 = scalar_lea.vmem [#allocation7], %s230
        // Predicated region
        $region45: #{tpu_custom_call.1} parent=35 // pred_check
          %p232 = pneg %p80
        $region46: #{tpu_custom_call.1} parent=35 // pred_check_branch
          %234 = sbr.rel (%p232) target = $region48
        $region47: #{tpu_custom_call.1} parent=35 // pred_region
          %235 = dma.done %s228, 4096
        $region48: #{tpu_custom_call.1} parent=35 // pred_fallthru
          _
        %s236 = sand.u32 %s17, 1
        %s237 = scalar_lea.sflag [#allocation4], %s236
        %s238 = sand.u32 %s93, 1
        %s239 = smul.addr %s238, 16
        %s240 = scalar_lea.vmem [#allocation8], %s239
        // Predicated region
        $region49: #{tpu_custom_call.1} parent=35 // pred_check
          %p241 = pneg %p106
        $region50: #{tpu_custom_call.1} parent=35 // pred_check_branch
          %243 = sbr.rel (%p241) target = $region52
        $region51: #{tpu_custom_call.1} parent=35 // pred_region
          %244 = dma.done %s237, 256
        $region52: #{tpu_custom_call.1} parent=35 // pred_fallthru
          _
        %p245 = pneg %p33
        %p246 = pneg %p30
        %p247 = pneg %p54
        %p248 = pneg %p51
        %s249 = sand.u32 %s17, 1
        %s250 = scalar_lea.sflag [#allocation4], %s249
        %s251 = sand.u32 %s67, 1
        %s252 = smul.addr %s251, 256
        %s253 = scalar_lea.vmem [#allocation7], %s252
        %p254 = pneg %p80
        %p255 = pneg %p77
        %s256 = sand.u32 %s17, 1
        %s257 = scalar_lea.sflag [#allocation4], %s256
        %s258 = sand.u32 %s93, 1
        %s259 = smul.addr %s258, 16
        %s260 = scalar_lea.vmem [#allocation8], %s259
        %p261 = pneg %p106
        %p262 = pneg %p103
        %p263 = pneg %p127
        %p264 = pneg %p124
        %p266 = scmp.eq.s32.totalorder %s17, 0
        // Predicated region
        $region53: #{tpu_custom_call.1} parent=35 // pred_check
          %p267 = pneg %p266
        $region54: #{tpu_custom_call.1} parent=35 // pred_check_branch
          %269 = sbr.rel (%p267) target = $region56
        $region55: #{tpu_custom_call.1} parent=35 // pred_region
          %v270 = vld [vmem:[#allocation3] sm:$0xff]
          %v271 = vld [vmem:[#allocation3 + $0x8] sm:$0xff]
          %v272 = vld [vmem:[#allocation3 + $0x10] sm:$0xff]
          %v273 = vld [vmem:[#allocation3 + $0x18] sm:$0xff]
          %v274 = vld [vmem:[#allocation5] sm:$0xff]
          %v275 = vld [vmem:[#allocation5 + $0x8] sm:$0x1]
          %vm276 = vcmask 449536
          %v278 = vsel %vm276, %v270, 0
          %v281 = vsel %vm276, %v271, 0
          %v284 = vsel %vm276, %v272, 0
          %v287 = vsel %vm276, %v273, 0
          %v290 = vsel %vm276, %v274, 0
          %v293 = vsel %vm276, %v275, 0
          %295 = vmatprep.subr.mxu0 0.0
          %296 = vmatpush1.xpose.msra.mxu0 %v290
          %297 = vmatprep.subr.mxu0 0.0
          %298 = vmatpush1.xpose.msra.mxu0 %v293
          %299 = vmatprep.subr.mxu0 0.0
          %300 = vmatpush1.xpose.msra.mxu0 0.0
          %301 = vmatprep.subr.mxu0 0.0
          %302 = vmatpush1.xpose.msra.mxu0 0.0
          %303 = vmatprep.subr.mxu0 0.0
          %304 = vmatpush1.xpose.msra.mxu0 0.0
          %305 = vmatprep.subr.mxu0 0.0
          %306 = vmatpush1.xpose.msra.mxu0 0.0
          %307 = vmatprep.subr.mxu0 0.0
          %308 = vmatpush1.xpose.msra.mxu0 0.0
          %309 = vmatprep.subr.mxu0 0.0
          %310 = vmatpush1.xpose.msra.mxu0 0.0
          %311 = vmatprep.subr.mxu0 0.0
          %312 = vmatpush1.xpose.msra.mxu0 0.0
          %313 = vmatprep.subr.mxu0 0.0
          %314 = vmatpush1.xpose.msra.mxu0 0.0
          %315 = vmatprep.subr.mxu0 0.0
          %316 = vmatpush1.xpose.msra.mxu0 0.0
          %317 = vmatprep.subr.mxu0 0.0
          %318 = vmatpush1.xpose.msra.mxu0 0.0
          %319 = vmatprep.subr.mxu0 0.0
          %320 = vmatpush1.xpose.msra.mxu0 0.0
          %321 = vmatprep.subr.mxu0 0.0
          %322 = vmatpush1.xpose.msra.mxu0 0.0
          %323 = vmatprep.subr.mxu0 0.0
          %324 = vmatpush1.xpose.msra.mxu0 0.0
          %325 = vmatprep.subr.mxu0 0.0
          %326 = vmatpush1.xpose.msra.mxu0 0.0
          %327 = vmatprep.subr.mxu0 0.0
          %328 = vmatpush1.xpose.msra.mxu0 0.0
          %329 = vmatprep.subr.mxu0 0.0
          %330 = vmatpush1.xpose.msra.mxu0 0.0
          %331 = vmatprep.subr.mxu0 0.0
          %332 = vmatpush1.xpose.msra.mxu0 0.0
          %333 = vmatprep.subr.mxu0 0.0
          %334 = vmatpush1.xpose.msra.mxu0 0.0
          %335 = vmatprep.subr.mxu0 0.0
          %336 = vmatpush1.xpose.msra.mxu0 0.0
          %337 = vmatprep.subr.mxu0 0.0
          %338 = vmatpush1.xpose.msra.mxu0 0.0
          %339 = vmatprep.subr.mxu0 0.0
          %340 = vmatpush1.xpose.msra.mxu0 0.0
          %341 = vmatprep.subr.mxu0 0.0
          %342 = vmatpush1.xpose.msra.mxu0 0.0
          %343 = vmatprep.subr.mxu0 0.0
          %344 = vmatpush1.xpose.msra.mxu0 0.0
          %345 = vmatprep.subr.mxu0 0.0
          %346 = vmatpush1.xpose.msra.mxu0 0.0
          %347 = vmatprep.subr.mxu0 0.0
          %348 = vmatpush1.xpose.msra.mxu0 0.0
          %349 = vmatprep.subr.mxu0 0.0
          %350 = vmatpush1.xpose.msra.mxu0 0.0
          %351 = vmatprep.subr.mxu0 0.0
          %352 = vmatpush1.xpose.msra.mxu0 0.0
          %353 = vmatprep.subr.mxu0 0.0
          %354 = vmatpush1.xpose.msra.mxu0 0.0
          %355 = vmatprep.subr.mxu0 0.0
          %356 = vmatpush1.xpose.msra.mxu0 0.0
          %357 = vmatprep.subr.mxu0 0.0
          %358 = vmatpush1.xpose.msra.mxu0 0.0
          %359 = vmatprep.mubr.f32.mxu0 0.0
          %360 = vmatmul.mubr.f32.gmra.mrb[0].mxu0 %v278
          %v361 = vpop.f32.mrb[0].mxu0
          %v362 = vadd.f32 0.0, %v361
          %v363 = vpop.f32.mrb[0].mxu0
          %364 = vmatprep.mubr.f32.mxu0 0.0
          %365 = vmatmul.mubr.f32.gmra.mrb[0].mxu0 %v281
          %v366 = vpop.f32.mrb[0].mxu0
          %v367 = vadd.f32 0.0, %v366
          %v368 = vpop.f32.mrb[0].mxu0
          %369 = vmatprep.mubr.f32.mxu0 0.0
          %370 = vmatmul.mubr.f32.gmra.mrb[0].mxu0 %v284
          %v371 = vpop.f32.mrb[0].mxu0
          %v372 = vadd.f32 0.0, %v371
          %v373 = vpop.f32.mrb[0].mxu0
          %374 = vmatprep.mubr.f32.mxu0 0.0
          %375 = vmatmul.mubr.f32.gmra.mrb[0].mxu0 %v287
          %v376 = vpop.f32.mrb[0].mxu0
          %v377 = vadd.f32 0.0, %v376
          %v378 = vpop.f32.mrb[0].mxu0
          %379 = vdwg.mxu0
          %v380 = vtanh.pop %v362
          %v381 = vtanh.pop %v367
          %v382 = vtanh.pop %v372
          %v383 = vtanh.pop %v377
          %v384 = vmul.f32 %v380, 1.5707964
          %v385 = vmul.f32 %v381, 1.5707964
          %v386 = vmul.f32 %v382, 1.5707964
          %v387 = vmul.f32 %v383, 1.5707964
          %v388 = vmul.f32 %v384, 0.5
          %v389 = vmul.f32 %v385, 0.5
          %v390 = vmul.f32 %v386, 0.5
          %v391 = vmul.f32 %v387, 0.5
          %v392 = vand.u32 2147483647, %v388
          %vm393 = vcmp.le.f32.partialorder %v392, 0.7853982
          %vm394 = vcmp.lt.s32.totalorder %v388, 0
          %v395 = vand.u32 %v388, 2139095040
          %v396 = vshrl.u32 %v395, 23
          %v397 = vsub.s32 %v396, 127
          %v398 = vand.u32 2147483647, %v388
          %v399 = vand.u32 %v398, 8388607
          %v400 = vor.u32 %v399, 8388608
          %v401 = vsub.s32 0, %v400
          %v402 = vadd.s32 %v397, 1
          %vm403 = vcmp.gt.s32.totalorder %v402, 0
          %v404 = vsel %vm403, %v402, 0
          %v405 = vshrl.u32 %v404, 5
          %v406 = vand.u32 %v404, 31
          %v407 = vsub.s32 32, %v406
          %v408 = vshrl.u32 683565275, %v407
          %v409 = vshll.u32 683565275, %v406
          %v410 = vshrl.u32 2475754826, %v407
          %v411 = vor.u32 %v409, %v410
          %v412 = vshll.u32 2475754826, %v406
          %v413 = vshrl.u32 2131351028, %v407
          %v414 = vor.u32 %v412, %v413
          %v415 = vshll.u32 2131351028, %v406
          %v416 = vshrl.u32 2102212464, %v407
          %v417 = vor.u32 %v415, %v416
          %v418 = vshll.u32 2102212464, %v406
          %v419 = vshrl.u32 920167782, %v407
          %v420 = vor.u32 %v418, %v419
          %v421 = vshll.u32 920167782, %v406
          %v422 = vshrl.u32 1326507024, %v407
          %v423 = vor.u32 %v421, %v422
          %vm424 = vcmp.lt.s32.totalorder %v405, 1
          %vm425 = vcmp.lt.s32.totalorder %v405, 2
          %vm426 = vcmp.lt.s32.totalorder %v405, 3
          %vm427 = vcmp.lt.s32.totalorder %v405, 4
          %v428 = vsel %vm424, %v408, %v411
          %v429 = vsel %vm427, %v417, 2102212464
          %v430 = vsel %vm426, %v414, %v429
          %v431 = vsel %vm425, %v428, %v430
          %v432 = vsel %vm424, %v411, %v414
          %v433 = vsel %vm427, %v420, 920167782
          %v434 = vsel %vm426, %v417, %v433
          %v435 = vsel %vm425, %v432, %v434
          %v436 = vsel %vm424, %v414, %v417
          %v437 = vsel %vm427, %v423, 1326507024
          %v438 = vsel %vm426, %v420, %v437
          %v439 = vsel %vm425, %v436, %v438
          %v440 = vshll.u32 %v400, 8
          %v441 = vmul.u32.u64.compose %v440, %v439
          %v442 = vextract.low.u32 %v441
          %v443 = vextract.high.u32 %v441
          %v444 = vmul.u32.u64.compose %v440, %v435
          %v445 = vextract.low.u32 %v444
          %v446 = vextract.high.u32 %v444
          %v447 = vmul.u32 %v440, %v431
          %v448 = vadd.s32 %v443, %v445
          %vm449 = vc.u32 %v443, %v445
          %v450 = vadd.s32 %v446, 1
          %v451 = vsel %vm449, %v450, %v446
          %v452 = vadd.s32 %v447, %v451
          %v453 = vadd.s32 %v452, 536870912
          %v454 = vshrl.u32 %v453, 30
          %v455 = vshll.u32 %v454, 30
          %v456 = vsub.s32 %v452, %v455
          %vm457 = vcmp.lt.s32.totalorder %v456, 0
          %v458 = vsub.s32 0, %v456
          %v459 = vsel %vm457, %v458, %v456
          %v460 = vclz %v459
          %v461 = vsub.s32 %v460, 2
          %vm462 = vcmp.gt.s32.totalorder 0, %v461
          %v463 = vsel %vm462, 0, %v461
          %v464 = vsub.s32 32, %v463
          %v465 = vshll.u32 %v456, %v463
          %v466 = vshrl.u32 %v448, %v464
          %v467 = vor.u32 %v465, %v466
          %v468 = vsub.s32 4294967266, %v463
          %v469 = vadd.s32 %v468, 127
          %v470 = vshll.u32 %v469, 23
          %v471 = vor.u32 4788187, %v470
          %v472 = vand.u32 2147483647, %v471
          %v474 = vcvt.s32.f32 %v467
          %v475 = vmul.f32 %v474, %v472
          %v476 = vxor.u32 %v475, 2147483648
          %v477 = vsel %vm394, %v476, %v475
          %v478 = vsub.s32 4, %v454
          %v479 = vsel %vm394, %v478, %v454
          %v480 = vsel %vm393, %v388, %v477
          %v481 = vsel %vm393, 0, %v479
          %v482 = vcosq.f32.pop %v480
          %v483 = vsinq.f32.pop %v480
          %vm484 = vweird.f32 %v388
          %v485 = vand.u32 %v481, 3
          %vm486 = vcmp.lt.s32.totalorder %v485, 2
          %vm487 = vcmp.eq.s32.totalorder %v485, 0
          %v488 = vxor.u32 %v483, 2147483648
          %v489 = vsel %vm487, %v482, %v488
          %vm490 = vcmp.eq.s32.totalorder %v485, 2
          %v491 = vxor.u32 %v482, 2147483648
          %v492 = vsel %vm490, %v491, %v483
          %v493 = vsel %vm486, %v489, %v492
          %v494 = vsel %vm484, nan, %v493
          %v495 = vand.u32 2147483647, %v389
          %vm496 = vcmp.le.f32.partialorder %v495, 0.7853982
          %vm497 = vcmp.lt.s32.totalorder %v389, 0
          %v498 = vand.u32 %v389, 2139095040
          %v499 = vshrl.u32 %v498, 23
          %v500 = vsub.s32 %v499, 127
          %v501 = vand.u32 2147483647, %v389
          %v502 = vand.u32 %v501, 8388607
          %v503 = vor.u32 %v502, 8388608
          %v504 = vsub.s32 0, %v503
          %v505 = vadd.s32 %v500, 1
          %vm506 = vcmp.gt.s32.totalorder %v505, 0
          %v507 = vsel %vm506, %v505, 0
          %v508 = vshrl.u32 %v507, 5
          %v509 = vand.u32 %v507, 31
          %v510 = vsub.s32 32, %v509
          %v511 = vshrl.u32 683565275, %v510
          %v512 = vshll.u32 683565275, %v509
          %v513 = vshrl.u32 2475754826, %v510
          %v514 = vor.u32 %v512, %v513
          %v515 = vshll.u32 2475754826, %v509
          %v516 = vshrl.u32 2131351028, %v510
          %v517 = vor.u32 %v515, %v516
          %v518 = vshll.u32 2131351028, %v509
          %v519 = vshrl.u32 2102212464, %v510
          %v520 = vor.u32 %v518, %v519
          %v521 = vshll.u32 2102212464, %v509
          %v522 = vshrl.u32 920167782, %v510
          %v523 = vor.u32 %v521, %v522
          %v524 = vshll.u32 920167782, %v509
          %v525 = vshrl.u32 1326507024, %v510
          %v526 = vor.u32 %v524, %v525
          %vm527 = vcmp.lt.s32.totalorder %v508, 1
          %vm528 = vcmp.lt.s32.totalorder %v508, 2
          %vm529 = vcmp.lt.s32.totalorder %v508, 3
          %vm530 = vcmp.lt.s32.totalorder %v508, 4
          %v531 = vsel %vm527, %v511, %v514
          %v532 = vsel %vm530, %v520, 2102212464
          %v533 = vsel %vm529, %v517, %v532
          %v534 = vsel %vm528, %v531, %v533
          %v535 = vsel %vm527, %v514, %v517
          %v536 = vsel %vm530, %v523, 920167782
          %v537 = vsel %vm529, %v520, %v536
          %v538 = vsel %vm528, %v535, %v537
          %v539 = vsel %vm527, %v517, %v520
          %v540 = vsel %vm530, %v526, 1326507024
          %v541 = vsel %vm529, %v523, %v540
          %v542 = vsel %vm528, %v539, %v541
          %v543 = vshll.u32 %v503, 8
          %v544 = vmul.u32.u64.compose %v543, %v542
          %v545 = vextract.low.u32 %v544
          %v546 = vextract.high.u32 %v544
          %v547 = vmul.u32.u64.compose %v543, %v538
          %v548 = vextract.low.u32 %v547
          %v549 = vextract.high.u32 %v547
          %v550 = vmul.u32 %v543, %v534
          %v551 = vadd.s32 %v546, %v548
          %vm552 = vc.u32 %v546, %v548
          %v553 = vadd.s32 %v549, 1
          %v554 = vsel %vm552, %v553, %v549
          %v555 = vadd.s32 %v550, %v554
          %v556 = vadd.s32 %v555, 536870912
          %v557 = vshrl.u32 %v556, 30
          %v558 = vshll.u32 %v557, 30
          %v559 = vsub.s32 %v555, %v558
          %vm560 = vcmp.lt.s32.totalorder %v559, 0
          %v561 = vsub.s32 0, %v559
          %v562 = vsel %vm560, %v561, %v559
          %v563 = vclz %v562
          %v564 = vsub.s32 %v563, 2
          %vm565 = vcmp.gt.s32.totalorder 0, %v564
          %v566 = vsel %vm565, 0, %v564
          %v567 = vsub.s32 32, %v566
          %v568 = vshll.u32 %v559, %v566
          %v569 = vshrl.u32 %v551, %v567
          %v570 = vor.u32 %v568, %v569
          %v571 = vsub.s32 4294967266, %v566
          %v572 = vadd.s32 %v571, 127
          %v573 = vshll.u32 %v572, 23
          %v574 = vor.u32 4788187, %v573
          %v575 = vand.u32 2147483647, %v574
          %v577 = vcvt.s32.f32 %v570
          %v578 = vmul.f32 %v577, %v575
          %v579 = vxor.u32 %v578, 2147483648
          %v580 = vsel %vm497, %v579, %v578
          %v581 = vsub.s32 4, %v557
          %v582 = vsel %vm497, %v581, %v557
          %v583 = vsel %vm496, %v389, %v580
          %v584 = vsel %vm496, 0, %v582
          %v585 = vcosq.f32.pop %v583
          %v586 = vsinq.f32.pop %v583
          %vm587 = vweird.f32 %v389
          %v588 = vand.u32 %v584, 3
          %vm589 = vcmp.lt.s32.totalorder %v588, 2
          %vm590 = vcmp.eq.s32.totalorder %v588, 0
          %v591 = vxor.u32 %v586, 2147483648
          %v592 = vsel %vm590, %v585, %v591
          %vm593 = vcmp.eq.s32.totalorder %v588, 2
          %v594 = vxor.u32 %v585, 2147483648
          %v595 = vsel %vm593, %v594, %v586
          %v596 = vsel %vm589, %v592, %v595
          %v597 = vsel %vm587, nan, %v596
          %v598 = vand.u32 2147483647, %v390
          %vm599 = vcmp.le.f32.partialorder %v598, 0.7853982
          %vm600 = vcmp.lt.s32.totalorder %v390, 0
          %v601 = vand.u32 %v390, 2139095040
          %v602 = vshrl.u32 %v601, 23
          %v603 = vsub.s32 %v602, 127
          %v604 = vand.u32 2147483647, %v390
          %v605 = vand.u32 %v604, 8388607
          %v606 = vor.u32 %v605, 8388608
          %v607 = vsub.s32 0, %v606
          %v608 = vadd.s32 %v603, 1
          %vm609 = vcmp.gt.s32.totalorder %v608, 0
          %v610 = vsel %vm609, %v608, 0
          %v611 = vshrl.u32 %v610, 5
          %v612 = vand.u32 %v610, 31
          %v613 = vsub.s32 32, %v612
          %v614 = vshrl.u32 683565275, %v613
          %v615 = vshll.u32 683565275, %v612
          %v616 = vshrl.u32 2475754826, %v613
          %v617 = vor.u32 %v615, %v616
          %v618 = vshll.u32 2475754826, %v612
          %v619 = vshrl.u32 2131351028, %v613
          %v620 = vor.u32 %v618, %v619
          %v621 = vshll.u32 2131351028, %v612
          %v622 = vshrl.u32 2102212464, %v613
          %v623 = vor.u32 %v621, %v622
          %v624 = vshll.u32 2102212464, %v612
          %v625 = vshrl.u32 920167782, %v613
          %v626 = vor.u32 %v624, %v625
          %v627 = vshll.u32 920167782, %v612
          %v628 = vshrl.u32 1326507024, %v613
          %v629 = vor.u32 %v627, %v628
          %vm630 = vcmp.lt.s32.totalorder %v611, 1
          %vm631 = vcmp.lt.s32.totalorder %v611, 2
          %vm632 = vcmp.lt.s32.totalorder %v611, 3
          %vm633 = vcmp.lt.s32.totalorder %v611, 4
          %v634 = vsel %vm630, %v614, %v617
          %v635 = vsel %vm633, %v623, 2102212464
          %v636 = vsel %vm632, %v620, %v635
          %v637 = vsel %vm631, %v634, %v636
          %v638 = vsel %vm630, %v617, %v620
          %v639 = vsel %vm633, %v626, 920167782
          %v640 = vsel %vm632, %v623, %v639
          %v641 = vsel %vm631, %v638, %v640
          %v642 = vsel %vm630, %v620, %v623
          %v643 = vsel %vm633, %v629, 1326507024
          %v644 = vsel %vm632, %v626, %v643
          %v645 = vsel %vm631, %v642, %v644
          %v646 = vshll.u32 %v606, 8
          %v647 = vmul.u32.u64.compose %v646, %v645
          %v648 = vextract.low.u32 %v647
          %v649 = vextract.high.u32 %v647
          %v650 = vmul.u32.u64.compose %v646, %v641
          %v651 = vextract.low.u32 %v650
          %v652 = vextract.high.u32 %v650
          %v653 = vmul.u32 %v646, %v637
          %v654 = vadd.s32 %v649, %v651
          %vm655 = vc.u32 %v649, %v651
          %v656 = vadd.s32 %v652, 1
          %v657 = vsel %vm655, %v656, %v652
          %v658 = vadd.s32 %v653, %v657
          %v659 = vadd.s32 %v658, 536870912
          %v660 = vshrl.u32 %v659, 30
          %v661 = vshll.u32 %v660, 30
          %v662 = vsub.s32 %v658, %v661
          %vm663 = vcmp.lt.s32.totalorder %v662, 0
          %v664 = vsub.s32 0, %v662
          %v665 = vsel %vm663, %v664, %v662
          %v666 = vclz %v665
          %v667 = vsub.s32 %v666, 2
          %vm668 = vcmp.gt.s32.totalorder 0, %v667
          %v669 = vsel %vm668, 0, %v667
          %v670 = vsub.s32 32, %v669
          %v671 = vshll.u32 %v662, %v669
          %v672 = vshrl.u32 %v654, %v670
          %v673 = vor.u32 %v671, %v672
          %v674 = vsub.s32 4294967266, %v669
          %v675 = vadd.s32 %v674, 127
          %v676 = vshll.u32 %v675, 23
          %v677 = vor.u32 4788187, %v676
          %v678 = vand.u32 2147483647, %v677
          %v680 = vcvt.s32.f32 %v673
          %v681 = vmul.f32 %v680, %v678
          %v682 = vxor.u32 %v681, 2147483648
          %v683 = vsel %vm600, %v682, %v681
          %v684 = vsub.s32 4, %v660
          %v685 = vsel %vm600, %v684, %v660
          %v686 = vsel %vm599, %v390, %v683
          %v687 = vsel %vm599, 0, %v685
          %v688 = vcosq.f32.pop %v686
          %v689 = vsinq.f32.pop %v686
          %vm690 = vweird.f32 %v390
          %v691 = vand.u32 %v687, 3
          %vm692 = vcmp.lt.s32.totalorder %v691, 2
          %vm693 = vcmp.eq.s32.totalorder %v691, 0
          %v694 = vxor.u32 %v689, 2147483648
          %v695 = vsel %vm693, %v688, %v694
          %vm696 = vcmp.eq.s32.totalorder %v691, 2
          %v697 = vxor.u32 %v688, 2147483648
          %v698 = vsel %vm696, %v697, %v689
          %v699 = vsel %vm692, %v695, %v698
          %v700 = vsel %vm690, nan, %v699
          %v701 = vand.u32 2147483647, %v391
          %vm702 = vcmp.le.f32.partialorder %v701, 0.7853982
          %vm703 = vcmp.lt.s32.totalorder %v391, 0
          %v704 = vand.u32 %v391, 2139095040
          %v705 = vshrl.u32 %v704, 23
          %v706 = vsub.s32 %v705, 127
          %v707 = vand.u32 2147483647, %v391
          %v708 = vand.u32 %v707, 8388607
          %v709 = vor.u32 %v708, 8388608
          %v710 = vsub.s32 0, %v709
          %v711 = vadd.s32 %v706, 1
          %vm712 = vcmp.gt.s32.totalorder %v711, 0
          %v713 = vsel %vm712, %v711, 0
          %v714 = vshrl.u32 %v713, 5
          %v715 = vand.u32 %v713, 31
          %v716 = vsub.s32 32, %v715
          %v717 = vshrl.u32 683565275, %v716
          %v718 = vshll.u32 683565275, %v715
          %v719 = vshrl.u32 2475754826, %v716
          %v720 = vor.u32 %v718, %v719
          %v721 = vshll.u32 2475754826, %v715
          %v722 = vshrl.u32 2131351028, %v716
          %v723 = vor.u32 %v721, %v722
          %v724 = vshll.u32 2131351028, %v715
          %v725 = vshrl.u32 2102212464, %v716
          %v726 = vor.u32 %v724, %v725
          %v727 = vshll.u32 2102212464, %v715
          %v728 = vshrl.u32 920167782, %v716
          %v729 = vor.u32 %v727, %v728
          %v730 = vshll.u32 920167782, %v715
          %v731 = vshrl.u32 1326507024, %v716
          %v732 = vor.u32 %v730, %v731
          %vm733 = vcmp.lt.s32.totalorder %v714, 1
          %vm734 = vcmp.lt.s32.totalorder %v714, 2
          %vm735 = vcmp.lt.s32.totalorder %v714, 3
          %vm736 = vcmp.lt.s32.totalorder %v714, 4
          %v737 = vsel %vm733, %v717, %v720
          %v738 = vsel %vm736, %v726, 2102212464
          %v739 = vsel %vm735, %v723, %v738
          %v740 = vsel %vm734, %v737, %v739
          %v741 = vsel %vm733, %v720, %v723
          %v742 = vsel %vm736, %v729, 920167782
          %v743 = vsel %vm735, %v726, %v742
          %v744 = vsel %vm734, %v741, %v743
          %v745 = vsel %vm733, %v723, %v726
          %v746 = vsel %vm736, %v732, 1326507024
          %v747 = vsel %vm735, %v729, %v746
          %v748 = vsel %vm734, %v745, %v747
          %v749 = vshll.u32 %v709, 8
          %v750 = vmul.u32.u64.compose %v749, %v748
          %v751 = vextract.low.u32 %v750
          %v752 = vextract.high.u32 %v750
          %v753 = vmul.u32.u64.compose %v749, %v744
          %v754 = vextract.low.u32 %v753
          %v755 = vextract.high.u32 %v753
          %v756 = vmul.u32 %v749, %v740
          %v757 = vadd.s32 %v752, %v754
          %vm758 = vc.u32 %v752, %v754
          %v759 = vadd.s32 %v755, 1
          %v760 = vsel %vm758, %v759, %v755
          %v761 = vadd.s32 %v756, %v760
          %v762 = vadd.s32 %v761, 536870912
          %v763 = vshrl.u32 %v762, 30
          %v764 = vshll.u32 %v763, 30
          %v765 = vsub.s32 %v761, %v764
          %vm766 = vcmp.lt.s32.totalorder %v765, 0
          %v767 = vsub.s32 0, %v765
          %v768 = vsel %vm766, %v767, %v765
          %v769 = vclz %v768
          %v770 = vsub.s32 %v769, 2
          %vm771 = vcmp.gt.s32.totalorder 0, %v770
          %v772 = vsel %vm771, 0, %v770
          %v773 = vsub.s32 32, %v772
          %v774 = vshll.u32 %v765, %v772
          %v775 = vshrl.u32 %v757, %v773
          %v776 = vor.u32 %v774, %v775
          %v777 = vsub.s32 4294967266, %v772
          %v778 = vadd.s32 %v777, 127
          %v779 = vshll.u32 %v778, 23
          %v780 = vor.u32 4788187, %v779
          %v781 = vand.u32 2147483647, %v780
          %v783 = vcvt.s32.f32 %v776
          %v784 = vmul.f32 %v783, %v781
          %v785 = vxor.u32 %v784, 2147483648
          %v786 = vsel %vm703, %v785, %v784
          %v787 = vsub.s32 4, %v763
          %v788 = vsel %vm703, %v787, %v763
          %v789 = vsel %vm702, %v391, %v786
          %v790 = vsel %vm702, 0, %v788
          %v791 = vcosq.f32.pop %v789
          %v792 = vsinq.f32.pop %v789
          %vm793 = vweird.f32 %v391
          %v794 = vand.u32 %v790, 3
          %vm795 = vcmp.lt.s32.totalorder %v794, 2
          %vm796 = vcmp.eq.s32.totalorder %v794, 0
          %v797 = vxor.u32 %v792, 2147483648
          %v798 = vsel %vm796, %v791, %v797
          %vm799 = vcmp.eq.s32.totalorder %v794, 2
          %v800 = vxor.u32 %v791, 2147483648
          %v801 = vsel %vm799, %v800, %v792
          %v802 = vsel %vm795, %v798, %v801
          %v803 = vsel %vm793, nan, %v802
          %v804 = vand.u32 2147483647, %v388
          %vm805 = vcmp.le.f32.partialorder %v804, 0.7853982
          %vm806 = vcmp.lt.s32.totalorder %v388, 0
          %v807 = vand.u32 %v388, 2139095040
          %v808 = vshrl.u32 %v807, 23
          %v809 = vsub.s32 %v808, 127
          %v810 = vand.u32 2147483647, %v388
          %v811 = vand.u32 %v810, 8388607
          %v812 = vor.u32 %v811, 8388608
          %v813 = vsub.s32 0, %v812
          %v814 = vadd.s32 %v809, 1
          %vm815 = vcmp.gt.s32.totalorder %v814, 0
          %v816 = vsel %vm815, %v814, 0
          %v817 = vshrl.u32 %v816, 5
          %v818 = vand.u32 %v816, 31
          %v819 = vsub.s32 32, %v818
          %v820 = vshrl.u32 683565275, %v819
          %v821 = vshll.u32 683565275, %v818
          %v822 = vshrl.u32 2475754826, %v819
          %v823 = vor.u32 %v821, %v822
          %v824 = vshll.u32 2475754826, %v818
          %v825 = vshrl.u32 2131351028, %v819
          %v826 = vor.u32 %v824, %v825
          %v827 = vshll.u32 2131351028, %v818
          %v828 = vshrl.u32 2102212464, %v819
          %v829 = vor.u32 %v827, %v828
          %v830 = vshll.u32 2102212464, %v818
          %v831 = vshrl.u32 920167782, %v819
          %v832 = vor.u32 %v830, %v831
          %v833 = vshll.u32 920167782, %v818
          %v834 = vshrl.u32 1326507024, %v819
          %v835 = vor.u32 %v833, %v834
          %vm836 = vcmp.lt.s32.totalorder %v817, 1
          %vm837 = vcmp.lt.s32.totalorder %v817, 2
          %vm838 = vcmp.lt.s32.totalorder %v817, 3
          %vm839 = vcmp.lt.s32.totalorder %v817, 4
          %v840 = vsel %vm836, %v820, %v823
          %v841 = vsel %vm839, %v829, 2102212464
          %v842 = vsel %vm838, %v826, %v841
          %v843 = vsel %vm837, %v840, %v842
          %v844 = vsel %vm836, %v823, %v826
          %v845 = vsel %vm839, %v832, 920167782
          %v846 = vsel %vm838, %v829, %v845
          %v847 = vsel %vm837, %v844, %v846
          %v848 = vsel %vm836, %v826, %v829
          %v849 = vsel %vm839, %v835, 1326507024
          %v850 = vsel %vm838, %v832, %v849
          %v851 = vsel %vm837, %v848, %v850
          %v852 = vshll.u32 %v812, 8
          %v853 = vmul.u32.u64.compose %v852, %v851
          %v854 = vextract.low.u32 %v853
          %v855 = vextract.high.u32 %v853
          %v856 = vmul.u32.u64.compose %v852, %v847
          %v857 = vextract.low.u32 %v856
          %v858 = vextract.high.u32 %v856
          %v859 = vmul.u32 %v852, %v843
          %v860 = vadd.s32 %v855, %v857
          %vm861 = vc.u32 %v855, %v857
          %v862 = vadd.s32 %v858, 1
          %v863 = vsel %vm861, %v862, %v858
          %v864 = vadd.s32 %v859, %v863
          %v865 = vadd.s32 %v864, 536870912
          %v866 = vshrl.u32 %v865, 30
          %v867 = vshll.u32 %v866, 30
          %v868 = vsub.s32 %v864, %v867
          %vm869 = vcmp.lt.s32.totalorder %v868, 0
          %v870 = vsub.s32 0, %v868
          %v871 = vsel %vm869, %v870, %v868
          %v872 = vclz %v871
          %v873 = vsub.s32 %v872, 2
          %vm874 = vcmp.gt.s32.totalorder 0, %v873
          %v875 = vsel %vm874, 0, %v873
          %v876 = vsub.s32 32, %v875
          %v877 = vshll.u32 %v868, %v875
          %v878 = vshrl.u32 %v860, %v876
          %v879 = vor.u32 %v877, %v878
          %v880 = vsub.s32 4294967266, %v875
          %v881 = vadd.s32 %v880, 127
          %v882 = vshll.u32 %v881, 23
          %v883 = vor.u32 4788187, %v882
          %v884 = vand.u32 2147483647, %v883
          %v886 = vcvt.s32.f32 %v879
          %v887 = vmul.f32 %v886, %v884
          %v888 = vxor.u32 %v887, 2147483648
          %v889 = vsel %vm806, %v888, %v887
          %v890 = vsub.s32 4, %v866
          %v891 = vsel %vm806, %v890, %v866
          %v892 = vsel %vm805, %v388, %v889
          %v893 = vsel %vm805, 0, %v891
          %v894 = vcosq.f32.pop %v892
          %v895 = vsinq.f32.pop %v892
          %vm896 = vweird.f32 %v388
          %v897 = vadd.s32 %v893, 3
          %v898 = vand.u32 %v897, 3
          %vm899 = vcmp.lt.s32.totalorder %v898, 2
          %vm900 = vcmp.eq.s32.totalorder %v898, 0
          %v901 = vxor.u32 %v895, 2147483648
          %v902 = vsel %vm900, %v894, %v901
          %vm903 = vcmp.eq.s32.totalorder %v898, 2
          %v904 = vxor.u32 %v894, 2147483648
          %v905 = vsel %vm903, %v904, %v895
          %v906 = vsel %vm899, %v902, %v905
          %v907 = vsel %vm896, nan, %v906
          %v908 = vand.u32 2147483647, %v389
          %vm909 = vcmp.le.f32.partialorder %v908, 0.7853982
          %vm910 = vcmp.lt.s32.totalorder %v389, 0
          %v911 = vand.u32 %v389, 2139095040
          %v912 = vshrl.u32 %v911, 23
          %v913 = vsub.s32 %v912, 127
          %v914 = vand.u32 2147483647, %v389
          %v915 = vand.u32 %v914, 8388607
          %v916 = vor.u32 %v915, 8388608
          %v917 = vsub.s32 0, %v916
          %v918 = vadd.s32 %v913, 1
          %vm919 = vcmp.gt.s32.totalorder %v918, 0
          %v920 = vsel %vm919, %v918, 0
          %v921 = vshrl.u32 %v920, 5
          %v922 = vand.u32 %v920, 31
          %v923 = vsub.s32 32, %v922
          %v924 = vshrl.u32 683565275, %v923
          %v925 = vshll.u32 683565275, %v922
          %v926 = vshrl.u32 2475754826, %v923
          %v927 = vor.u32 %v925, %v926
          %v928 = vshll.u32 2475754826, %v922
          %v929 = vshrl.u32 2131351028, %v923
          %v930 = vor.u32 %v928, %v929
          %v931 = vshll.u32 2131351028, %v922
          %v932 = vshrl.u32 2102212464, %v923
          %v933 = vor.u32 %v931, %v932
          %v934 = vshll.u32 2102212464, %v922
          %v935 = vshrl.u32 920167782, %v923
          %v936 = vor.u32 %v934, %v935
          %v937 = vshll.u32 920167782, %v922
          %v938 = vshrl.u32 1326507024, %v923
          %v939 = vor.u32 %v937, %v938
          %vm940 = vcmp.lt.s32.totalorder %v921, 1
          %vm941 = vcmp.lt.s32.totalorder %v921, 2
          %vm942 = vcmp.lt.s32.totalorder %v921, 3
          %vm943 = vcmp.lt.s32.totalorder %v921, 4
          %v944 = vsel %vm940, %v924, %v927
          %v945 = vsel %vm943, %v933, 2102212464
          %v946 = vsel %vm942, %v930, %v945
          %v947 = vsel %vm941, %v944, %v946
          %v948 = vsel %vm940, %v927, %v930
          %v949 = vsel %vm943, %v936, 920167782
          %v950 = vsel %vm942, %v933, %v949
          %v951 = vsel %vm941, %v948, %v950
          %v952 = vsel %vm940, %v930, %v933
          %v953 = vsel %vm943, %v939, 1326507024
          %v954 = vsel %vm942, %v936, %v953
          %v955 = vsel %vm941, %v952, %v954
          %v956 = vshll.u32 %v916, 8
          %v957 = vmul.u32.u64.compose %v956, %v955
          %v958 = vextract.low.u32 %v957
          %v959 = vextract.high.u32 %v957
          %v960 = vmul.u32.u64.compose %v956, %v951
          %v961 = vextract.low.u32 %v960
          %v962 = vextract.high.u32 %v960
          %v963 = vmul.u32 %v956, %v947
          %v964 = vadd.s32 %v959, %v961
          %vm965 = vc.u32 %v959, %v961
          %v966 = vadd.s32 %v962, 1
          %v967 = vsel %vm965, %v966, %v962
          %v968 = vadd.s32 %v963, %v967
          %v969 = vadd.s32 %v968, 536870912
          %v970 = vshrl.u32 %v969, 30
          %v971 = vshll.u32 %v970, 30
          %v972 = vsub.s32 %v968, %v971
          %vm973 = vcmp.lt.s32.totalorder %v972, 0
          %v974 = vsub.s32 0, %v972
          %v975 = vsel %vm973, %v974, %v972
          %v976 = vclz %v975
          %v977 = vsub.s32 %v976, 2
          %vm978 = vcmp.gt.s32.totalorder 0, %v977
          %v979 = vsel %vm978, 0, %v977
          %v980 = vsub.s32 32, %v979
          %v981 = vshll.u32 %v972, %v979
          %v982 = vshrl.u32 %v964, %v980
          %v983 = vor.u32 %v981, %v982
          %v984 = vsub.s32 4294967266, %v979
          %v985 = vadd.s32 %v984, 127
          %v986 = vshll.u32 %v985, 23
          %v987 = vor.u32 4788187, %v986
          %v988 = vand.u32 2147483647, %v987
          %v990 = vcvt.s32.f32 %v983
          %v991 = vmul.f32 %v990, %v988
          %v992 = vxor.u32 %v991, 2147483648
          %v993 = vsel %vm910, %v992, %v991
          %v994 = vsub.s32 4, %v970
          %v995 = vsel %vm910, %v994, %v970
          %v996 = vsel %vm909, %v389, %v993
          %v997 = vsel %vm909, 0, %v995
          %v998 = vcosq.f32.pop %v996
          %v999 = vsinq.f32.pop %v996
          %vm1000 = vweird.f32 %v389
          %v1001 = vadd.s32 %v997, 3
          %v1002 = vand.u32 %v1001, 3
          %vm1003 = vcmp.lt.s32.totalorder %v1002, 2
          %vm1004 = vcmp.eq.s32.totalorder %v1002, 0
          %v1005 = vxor.u32 %v999, 2147483648
          %v1006 = vsel %vm1004, %v998, %v1005
          %vm1007 = vcmp.eq.s32.totalorder %v1002, 2
          %v1008 = vxor.u32 %v998, 2147483648
          %v1009 = vsel %vm1007, %v1008, %v999
          %v1010 = vsel %vm1003, %v1006, %v1009
          %v1011 = vsel %vm1000, nan, %v1010
          %v1012 = vand.u32 2147483647, %v390
          %vm1013 = vcmp.le.f32.partialorder %v1012, 0.7853982
          %vm1014 = vcmp.lt.s32.totalorder %v390, 0
          %v1015 = vand.u32 %v390, 2139095040
          %v1016 = vshrl.u32 %v1015, 23
          %v1017 = vsub.s32 %v1016, 127
          %v1018 = vand.u32 2147483647, %v390
          %v1019 = vand.u32 %v1018, 8388607
          %v1020 = vor.u32 %v1019, 8388608
          %v1021 = vsub.s32 0, %v1020
          %v1022 = vadd.s32 %v1017, 1
          %vm1023 = vcmp.gt.s32.totalorder %v1022, 0
          %v1024 = vsel %vm1023, %v1022, 0
          %v1025 = vshrl.u32 %v1024, 5
          %v1026 = vand.u32 %v1024, 31
          %v1027 = vsub.s32 32, %v1026
          %v1028 = vshrl.u32 683565275, %v1027
          %v1029 = vshll.u32 683565275, %v1026
          %v1030 = vshrl.u32 2475754826, %v1027
          %v1031 = vor.u32 %v1029, %v1030
          %v1032 = vshll.u32 2475754826, %v1026
          %v1033 = vshrl.u32 2131351028, %v1027
          %v1034 = vor.u32 %v1032, %v1033
          %v1035 = vshll.u32 2131351028, %v1026
          %v1036 = vshrl.u32 2102212464, %v1027
          %v1037 = vor.u32 %v1035, %v1036
          %v1038 = vshll.u32 2102212464, %v1026
          %v1039 = vshrl.u32 920167782, %v1027
          %v1040 = vor.u32 %v1038, %v1039
          %v1041 = vshll.u32 920167782, %v1026
          %v1042 = vshrl.u32 1326507024, %v1027
          %v1043 = vor.u32 %v1041, %v1042
          %vm1044 = vcmp.lt.s32.totalorder %v1025, 1
          %vm1045 = vcmp.lt.s32.totalorder %v1025, 2
          %vm1046 = vcmp.lt.s32.totalorder %v1025, 3
          %vm1047 = vcmp.lt.s32.totalorder %v1025, 4
          %v1048 = vsel %vm1044, %v1028, %v1031
          %v1049 = vsel %vm1047, %v1037, 2102212464
          %v1050 = vsel %vm1046, %v1034, %v1049
          %v1051 = vsel %vm1045, %v1048, %v1050
          %v1052 = vsel %vm1044, %v1031, %v1034
          %v1053 = vsel %vm1047, %v1040, 920167782
          %v1054 = vsel %vm1046, %v1037, %v1053
          %v1055 = vsel %vm1045, %v1052, %v1054
          %v1056 = vsel %vm1044, %v1034, %v1037
          %v1057 = vsel %vm1047, %v1043, 1326507024
          %v1058 = vsel %vm1046, %v1040, %v1057
          %v1059 = vsel %vm1045, %v1056, %v1058
          %v1060 = vshll.u32 %v1020, 8
          %v1061 = vmul.u32.u64.compose %v1060, %v1059
          %v1062 = vextract.low.u32 %v1061
          %v1063 = vextract.high.u32 %v1061
          %v1064 = vmul.u32.u64.compose %v1060, %v1055
          %v1065 = vextract.low.u32 %v1064
          %v1066 = vextract.high.u32 %v1064
          %v1067 = vmul.u32 %v1060, %v1051
          %v1068 = vadd.s32 %v1063, %v1065
          %vm1069 = vc.u32 %v1063, %v1065
          %v1070 = vadd.s32 %v1066, 1
          %v1071 = vsel %vm1069, %v1070, %v1066
          %v1072 = vadd.s32 %v1067, %v1071
          %v1073 = vadd.s32 %v1072, 536870912
          %v1074 = vshrl.u32 %v1073, 30
          %v1075 = vshll.u32 %v1074, 30
          %v1076 = vsub.s32 %v1072, %v1075
          %vm1077 = vcmp.lt.s32.totalorder %v1076, 0
          %v1078 = vsub.s32 0, %v1076
          %v1079 = vsel %vm1077, %v1078, %v1076
          %v1080 = vclz %v1079
          %v1081 = vsub.s32 %v1080, 2
          %vm1082 = vcmp.gt.s32.totalorder 0, %v1081
          %v1083 = vsel %vm1082, 0, %v1081
          %v1084 = vsub.s32 32, %v1083
          %v1085 = vshll.u32 %v1076, %v1083
          %v1086 = vshrl.u32 %v1068, %v1084
          %v1087 = vor.u32 %v1085, %v1086
          %v1088 = vsub.s32 4294967266, %v1083
          %v1089 = vadd.s32 %v1088, 127
          %v1090 = vshll.u32 %v1089, 23
          %v1091 = vor.u32 4788187, %v1090
          %v1092 = vand.u32 2147483647, %v1091
          %v1094 = vcvt.s32.f32 %v1087
          %v1095 = vmul.f32 %v1094, %v1092
          %v1096 = vxor.u32 %v1095, 2147483648
          %v1097 = vsel %vm1014, %v1096, %v1095
          %v1098 = vsub.s32 4, %v1074
          %v1099 = vsel %vm1014, %v1098, %v1074
          %v1100 = vsel %vm1013, %v390, %v1097
          %v1101 = vsel %vm1013, 0, %v1099
          %v1102 = vcosq.f32.pop %v1100
          %v1103 = vsinq.f32.pop %v1100
          %vm1104 = vweird.f32 %v390
          %v1105 = vadd.s32 %v1101, 3
          %v1106 = vand.u32 %v1105, 3
          %vm1107 = vcmp.lt.s32.totalorder %v1106, 2
          %vm1108 = vcmp.eq.s32.totalorder %v1106, 0
          %v1109 = vxor.u32 %v1103, 2147483648
          %v1110 = vsel %vm1108, %v1102, %v1109
          %vm1111 = vcmp.eq.s32.totalorder %v1106, 2
          %v1112 = vxor.u32 %v1102, 2147483648
          %v1113 = vsel %vm1111, %v1112, %v1103
          %v1114 = vsel %vm1107, %v1110, %v1113
          %v1115 = vsel %vm1104, nan, %v1114
          %v1116 = vand.u32 2147483647, %v391
          %vm1117 = vcmp.le.f32.partialorder %v1116, 0.7853982
          %vm1118 = vcmp.lt.s32.totalorder %v391, 0
          %v1119 = vand.u32 %v391, 2139095040
          %v1120 = vshrl.u32 %v1119, 23
          %v1121 = vsub.s32 %v1120, 127
          %v1122 = vand.u32 2147483647, %v391
          %v1123 = vand.u32 %v1122, 8388607
          %v1124 = vor.u32 %v1123, 8388608
          %v1125 = vsub.s32 0, %v1124
          %v1126 = vadd.s32 %v1121, 1
          %vm1127 = vcmp.gt.s32.totalorder %v1126, 0
          %v1128 = vsel %vm1127, %v1126, 0
          %v1129 = vshrl.u32 %v1128, 5
          %v1130 = vand.u32 %v1128, 31
          %v1131 = vsub.s32 32, %v1130
          %v1132 = vshrl.u32 683565275, %v1131
          %v1133 = vshll.u32 683565275, %v1130
          %v1134 = vshrl.u32 2475754826, %v1131
          %v1135 = vor.u32 %v1133, %v1134
          %v1136 = vshll.u32 2475754826, %v1130
          %v1137 = vshrl.u32 2131351028, %v1131
          %v1138 = vor.u32 %v1136, %v1137
          %v1139 = vshll.u32 2131351028, %v1130
          %v1140 = vshrl.u32 2102212464, %v1131
          %v1141 = vor.u32 %v1139, %v1140
          %v1142 = vshll.u32 2102212464, %v1130
          %v1143 = vshrl.u32 920167782, %v1131
          %v1144 = vor.u32 %v1142, %v1143
          %v1145 = vshll.u32 920167782, %v1130
          %v1146 = vshrl.u32 1326507024, %v1131
          %v1147 = vor.u32 %v1145, %v1146
          %vm1148 = vcmp.lt.s32.totalorder %v1129, 1
          %vm1149 = vcmp.lt.s32.totalorder %v1129, 2
          %vm1150 = vcmp.lt.s32.totalorder %v1129, 3
          %vm1151 = vcmp.lt.s32.totalorder %v1129, 4
          %v1152 = vsel %vm1148, %v1132, %v1135
          %v1153 = vsel %vm1151, %v1141, 2102212464
          %v1154 = vsel %vm1150, %v1138, %v1153
          %v1155 = vsel %vm1149, %v1152, %v1154
          %v1156 = vsel %vm1148, %v1135, %v1138
          %v1157 = vsel %vm1151, %v1144, 920167782
          %v1158 = vsel %vm1150, %v1141, %v1157
          %v1159 = vsel %vm1149, %v1156, %v1158
          %v1160 = vsel %vm1148, %v1138, %v1141
          %v1161 = vsel %vm1151, %v1147, 1326507024
          %v1162 = vsel %vm1150, %v1144, %v1161
          %v1163 = vsel %vm1149, %v1160, %v1162
          %v1164 = vshll.u32 %v1124, 8
          %v1165 = vmul.u32.u64.compose %v1164, %v1163
          %v1166 = vextract.low.u32 %v1165
          %v1167 = vextract.high.u32 %v1165
          %v1168 = vmul.u32.u64.compose %v1164, %v1159
          %v1169 = vextract.low.u32 %v1168
          %v1170 = vextract.high.u32 %v1168
          %v1171 = vmul.u32 %v1164, %v1155
          %v1172 = vadd.s32 %v1167, %v1169
          %vm1173 = vc.u32 %v1167, %v1169
          %v1174 = vadd.s32 %v1170, 1
          %v1175 = vsel %vm1173, %v1174, %v1170
          %v1176 = vadd.s32 %v1171, %v1175
          %v1177 = vadd.s32 %v1176, 536870912
          %v1178 = vshrl.u32 %v1177, 30
          %v1179 = vshll.u32 %v1178, 30
          %v1180 = vsub.s32 %v1176, %v1179
          %vm1181 = vcmp.lt.s32.totalorder %v1180, 0
          %v1182 = vsub.s32 0, %v1180
          %v1183 = vsel %vm1181, %v1182, %v1180
          %v1184 = vclz %v1183
          %v1185 = vsub.s32 %v1184, 2
          %vm1186 = vcmp.gt.s32.totalorder 0, %v1185
          %v1187 = vsel %vm1186, 0, %v1185
          %v1188 = vsub.s32 32, %v1187
          %v1189 = vshll.u32 %v1180, %v1187
          %v1190 = vshrl.u32 %v1172, %v1188
          %v1191 = vor.u32 %v1189, %v1190
          %v1192 = vsub.s32 4294967266, %v1187
          %v1193 = vadd.s32 %v1192, 127
          %v1194 = vshll.u32 %v1193, 23
          %v1195 = vor.u32 4788187, %v1194
          %v1196 = vand.u32 2147483647, %v1195
          %v1198 = vcvt.s32.f32 %v1191
          %v1199 = vmul.f32 %v1198, %v1196
          %v1200 = vxor.u32 %v1199, 2147483648
          %v1201 = vsel %vm1118, %v1200, %v1199
          %v1202 = vsub.s32 4, %v1178
          %v1203 = vsel %vm1118, %v1202, %v1178
          %v1204 = vsel %vm1117, %v391, %v1201
          %v1205 = vsel %vm1117, 0, %v1203
          %v1206 = vcosq.f32.pop %v1204
          %v1207 = vsinq.f32.pop %v1204
          %vm1208 = vweird.f32 %v391
          %v1209 = vadd.s32 %v1205, 3
          %v1210 = vand.u32 %v1209, 3
          %vm1211 = vcmp.lt.s32.totalorder %v1210, 2
          %vm1212 = vcmp.eq.s32.totalorder %v1210, 0
          %v1213 = vxor.u32 %v1207, 2147483648
          %v1214 = vsel %vm1212, %v1206, %v1213
          %vm1215 = vcmp.eq.s32.totalorder %v1210, 2
          %v1216 = vxor.u32 %v1206, 2147483648
          %v1217 = vsel %vm1215, %v1216, %v1207
          %v1218 = vsel %vm1211, %v1214, %v1217
          %v1219 = vsel %vm1208, nan, %v1218
          %v1220 = vsub.f32 %v494, %v907
          %v1221 = vsub.f32 %v597, %v1011
          %v1222 = vsub.f32 %v700, %v1115
          %v1223 = vsub.f32 %v803, %v1219
          %v1224 = vmul.f32 %v1220, 0.70710677
          %v1225 = vmul.f32 %v1221, 0.70710677
          %v1226 = vmul.f32 %v1222, 0.70710677
          %v1227 = vmul.f32 %v1223, 0.70710677
          %v1228 = vmul.f32 %v907, 1.4142135
          %v1229 = vmul.f32 %v1011, 1.4142135
          %v1230 = vmul.f32 %v1115, 1.4142135
          %v1231 = vmul.f32 %v1219, 1.4142135
          %v1232 = vlaneseq
          %v1233 = vand.u32 %v1232, 127
          %v1234 = vadd.s32 %v1233, 128
          %v1235 = vadd.s32 %v1233, 256
          %v1236 = vadd.s32 %v1233, 384
          %v1237 = vshra.s32 %v1233, 8
          %v1238 = vshra.s32 %v1234, 8
          %v1239 = vshra.s32 %v1235, 8
          %v1240 = vshra.s32 %v1236, 8
          %v1241 = vand.u32 %v1237, 1
          %v1242 = vand.u32 %v1238, 1
          %v1243 = vand.u32 %v1239, 1
          %v1244 = vand.u32 %v1240, 1
          %v1245 = vcvt.s32.f32 %v1241
          %v1246 = vcvt.s32.f32 %v1242
          %v1247 = vcvt.s32.f32 %v1243
          %v1248 = vcvt.s32.f32 %v1244
          %1250 = vset.pattern.permute.xlu0 0
          %1251 = vperm.xlu0 %1250, %v1228
          %v1252 = vpop.permute.xlu0 %1251
          %1255 = vset.pattern.permute.xlu0 0
          %1256 = vperm.xlu0 %1255, %v1229
          %v1257 = vpop.permute.xlu0 %1256
          %1260 = vset.pattern.permute.xlu0 0
          %1261 = vperm.xlu0 %1260, %v1230
          %v1262 = vpop.permute.xlu0 %1261
          %1265 = vset.pattern.permute.xlu0 0
          %1266 = vperm.xlu0 %1265, %v1231
          %v1267 = vpop.permute.xlu0 %1266
          %v1269 = vmul.f32 %v1252, %v1245
          %v1270 = vmul.f32 %v1252, %v1246
          %v1271 = vmul.f32 %v1252, %v1247
          %v1272 = vmul.f32 %v1252, %v1248
          %v1273 = vmul.f32 %v1257, %v1245
          %v1274 = vmul.f32 %v1257, %v1246
          %v1275 = vmul.f32 %v1257, %v1247
          %v1276 = vmul.f32 %v1257, %v1248
          %v1277 = vmul.f32 %v1262, %v1245
          %v1278 = vmul.f32 %v1262, %v1246
          %v1279 = vmul.f32 %v1262, %v1247
          %v1280 = vmul.f32 %v1262, %v1248
          %v1281 = vmul.f32 %v1267, %v1245
          %v1282 = vmul.f32 %v1267, %v1246
          %v1283 = vmul.f32 %v1267, %v1247
          %v1284 = vmul.f32 %v1267, %v1248
          %1286 = vset.pattern.permute.xlu0 0
          %1287 = vperm.xlu0 %1286, %v1224
          %v1288 = vpop.permute.xlu0 %1287
          %1291 = vset.pattern.permute.xlu0 0
          %1292 = vperm.xlu0 %1291, %v1225
          %v1293 = vpop.permute.xlu0 %1292
          %1296 = vset.pattern.permute.xlu0 0
          %1297 = vperm.xlu0 %1296, %v1226
          %v1298 = vpop.permute.xlu0 %1297
          %1301 = vset.pattern.permute.xlu0 0
          %1302 = vperm.xlu0 %1301, %v1227
          %v1303 = vpop.permute.xlu0 %1302
          %v1305 = vadd.f32 %v1288, %v1269
          %v1306 = vadd.f32 %v1288, %v1270
          %v1307 = vadd.f32 %v1288, %v1271
          %v1308 = vadd.f32 %v1288, %v1272
          %v1309 = vadd.f32 %v1293, %v1273
          %v1310 = vadd.f32 %v1293, %v1274
          %v1311 = vadd.f32 %v1293, %v1275
          %v1312 = vadd.f32 %v1293, %v1276
          %v1313 = vadd.f32 %v1298, %v1277
          %v1314 = vadd.f32 %v1298, %v1278
          %v1315 = vadd.f32 %v1298, %v1279
          %v1316 = vadd.f32 %v1298, %v1280
          %v1317 = vadd.f32 %v1303, %v1281
          %v1318 = vadd.f32 %v1303, %v1282
          %v1319 = vadd.f32 %v1303, %v1283
          %v1320 = vadd.f32 %v1303, %v1284
          %v1321 = vshra.s32 %v1233, 7
          %v1322 = vshra.s32 %v1234, 7
          %v1323 = vshra.s32 %v1235, 7
          %v1324 = vshra.s32 %v1236, 7
          %v1325 = vand.u32 %v1321, 1
          %v1326 = vand.u32 %v1322, 1
          %v1327 = vand.u32 %v1323, 1
          %v1328 = vand.u32 %v1324, 1
          %v1329 = vcvt.s32.f32 %v1325
          %v1330 = vcvt.s32.f32 %v1326
          %v1331 = vcvt.s32.f32 %v1327
          %v1332 = vcvt.s32.f32 %v1328
          %1333 = vset.pattern.permute.xlu0 1
          %1334 = vperm.xlu0 %1333, %v1228
          %v1335 = vpop.permute.xlu0 %1334
          %1337 = vset.pattern.permute.xlu0 1
          %1338 = vperm.xlu0 %1337, %v1229
          %v1339 = vpop.permute.xlu0 %1338
          %1341 = vset.pattern.permute.xlu0 1
          %1342 = vperm.xlu0 %1341, %v1230
          %v1343 = vpop.permute.xlu0 %1342
          %1345 = vset.pattern.permute.xlu0 1
          %1346 = vperm.xlu0 %1345, %v1231
          %v1347 = vpop.permute.xlu0 %1346
          %v1349 = vmul.f32 %v1335, %v1329
          %v1350 = vmul.f32 %v1335, %v1330
          %v1351 = vmul.f32 %v1335, %v1331
          %v1352 = vmul.f32 %v1335, %v1332
          %v1353 = vmul.f32 %v1339, %v1329
          %v1354 = vmul.f32 %v1339, %v1330
          %v1355 = vmul.f32 %v1339, %v1331
          %v1356 = vmul.f32 %v1339, %v1332
          %v1357 = vmul.f32 %v1343, %v1329
          %v1358 = vmul.f32 %v1343, %v1330
          %v1359 = vmul.f32 %v1343, %v1331
          %v1360 = vmul.f32 %v1343, %v1332
          %v1361 = vmul.f32 %v1347, %v1329
          %v1362 = vmul.f32 %v1347, %v1330
          %v1363 = vmul.f32 %v1347, %v1331
          %v1364 = vmul.f32 %v1347, %v1332
          %1365 = vset.pattern.permute.xlu0 1
          %1366 = vperm.xlu0 %1365, %v1224
          %v1367 = vpop.permute.xlu0 %1366
          %1369 = vset.pattern.permute.xlu0 1
          %1370 = vperm.xlu0 %1369, %v1225
          %v1371 = vpop.permute.xlu0 %1370
          %1373 = vset.pattern.permute.xlu0 1
          %1374 = vperm.xlu0 %1373, %v1226
          %v1375 = vpop.permute.xlu0 %1374
          %1377 = vset.pattern.permute.xlu0 1
          %1378 = vperm.xlu0 %1377, %v1227
          %v1379 = vpop.permute.xlu0 %1378
          %v1381 = vadd.f32 %v1367, %v1349
          %v1382 = vadd.f32 %v1367, %v1350
          %v1383 = vadd.f32 %v1367, %v1351
          %v1384 = vadd.f32 %v1367, %v1352
          %v1385 = vadd.f32 %v1371, %v1353
          %v1386 = vadd.f32 %v1371, %v1354
          %v1387 = vadd.f32 %v1371, %v1355
          %v1388 = vadd.f32 %v1371, %v1356
          %v1389 = vadd.f32 %v1375, %v1357
          %v1390 = vadd.f32 %v1375, %v1358
          %v1391 = vadd.f32 %v1375, %v1359
          %v1392 = vadd.f32 %v1375, %v1360
          %v1393 = vadd.f32 %v1379, %v1361
          %v1394 = vadd.f32 %v1379, %v1362
          %v1395 = vadd.f32 %v1379, %v1363
          %v1396 = vadd.f32 %v1379, %v1364
          %v1397 = vmul.f32 %v1305, %v1381
          %v1398 = vmul.f32 %v1306, %v1382
          %v1399 = vmul.f32 %v1307, %v1383
          %v1400 = vmul.f32 %v1308, %v1384
          %v1401 = vmul.f32 %v1309, %v1385
          %v1402 = vmul.f32 %v1310, %v1386
          %v1403 = vmul.f32 %v1311, %v1387
          %v1404 = vmul.f32 %v1312, %v1388
          %v1405 = vmul.f32 %v1313, %v1389
          %v1406 = vmul.f32 %v1314, %v1390
          %v1407 = vmul.f32 %v1315, %v1391
          %v1408 = vmul.f32 %v1316, %v1392
          %v1409 = vmul.f32 %v1317, %v1393
          %v1410 = vmul.f32 %v1318, %v1394
          %v1411 = vmul.f32 %v1319, %v1395
          %v1412 = vmul.f32 %v1320, %v1396
          %v1413 = vshra.s32 %v1233, 6
          %v1414 = vshra.s32 %v1234, 6
          %v1415 = vshra.s32 %v1235, 6
          %v1416 = vshra.s32 %v1236, 6
          %v1417 = vand.u32 %v1413, 1
          %v1418 = vand.u32 %v1414, 1
          %v1419 = vand.u32 %v1415, 1
          %v1420 = vand.u32 %v1416, 1
          %v1421 = vcvt.s32.f32 %v1417
          %v1422 = vcvt.s32.f32 %v1418
          %v1423 = vcvt.s32.f32 %v1419
          %v1424 = vcvt.s32.f32 %v1420
          %1425 = vset.pattern.permute.xlu0 2
          %1426 = vperm.xlu0 %1425, %v1228
          %v1427 = vpop.permute.xlu0 %1426
          %1429 = vset.pattern.permute.xlu0 2
          %1430 = vperm.xlu0 %1429, %v1229
          %v1431 = vpop.permute.xlu0 %1430
          %1433 = vset.pattern.permute.xlu0 2
          %1434 = vperm.xlu0 %1433, %v1230
          %v1435 = vpop.permute.xlu0 %1434
          %1437 = vset.pattern.permute.xlu0 2
          %1438 = vperm.xlu0 %1437, %v1231
          %v1439 = vpop.permute.xlu0 %1438
          %v1441 = vmul.f32 %v1427, %v1421
          %v1442 = vmul.f32 %v1427, %v1422
          %v1443 = vmul.f32 %v1427, %v1423
          %v1444 = vmul.f32 %v1427, %v1424
          %v1445 = vmul.f32 %v1431, %v1421
          %v1446 = vmul.f32 %v1431, %v1422
          %v1447 = vmul.f32 %v1431, %v1423
          %v1448 = vmul.f32 %v1431, %v1424
          %v1449 = vmul.f32 %v1435, %v1421
          %v1450 = vmul.f32 %v1435, %v1422
          %v1451 = vmul.f32 %v1435, %v1423
          %v1452 = vmul.f32 %v1435, %v1424
          %v1453 = vmul.f32 %v1439, %v1421
          %v1454 = vmul.f32 %v1439, %v1422
          %v1455 = vmul.f32 %v1439, %v1423
          %v1456 = vmul.f32 %v1439, %v1424
          %1457 = vset.pattern.permute.xlu0 2
          %1458 = vperm.xlu0 %1457, %v1224
          %v1459 = vpop.permute.xlu0 %1458
          %1461 = vset.pattern.permute.xlu0 2
          %1462 = vperm.xlu0 %1461, %v1225
          %v1463 = vpop.permute.xlu0 %1462
          %1465 = vset.pattern.permute.xlu0 2
          %1466 = vperm.xlu0 %1465, %v1226
          %v1467 = vpop.permute.xlu0 %1466
          %1469 = vset.pattern.permute.xlu0 2
          %1470 = vperm.xlu0 %1469, %v1227
          %v1471 = vpop.permute.xlu0 %1470
          %v1473 = vadd.f32 %v1459, %v1441
          %v1474 = vadd.f32 %v1459, %v1442
          %v1475 = vadd.f32 %v1459, %v1443
          %v1476 = vadd.f32 %v1459, %v1444
          %v1477 = vadd.f32 %v1463, %v1445
          %v1478 = vadd.f32 %v1463, %v1446
          %v1479 = vadd.f32 %v1463, %v1447
          %v1480 = vadd.f32 %v1463, %v1448
          %v1481 = vadd.f32 %v1467, %v1449
          %v1482 = vadd.f32 %v1467, %v1450
          %v1483 = vadd.f32 %v1467, %v1451
          %v1484 = vadd.f32 %v1467, %v1452
          %v1485 = vadd.f32 %v1471, %v1453
          %v1486 = vadd.f32 %v1471, %v1454
          %v1487 = vadd.f32 %v1471, %v1455
          %v1488 = vadd.f32 %v1471, %v1456
          %v1489 = vmul.f32 %v1397, %v1473
          %v1490 = vmul.f32 %v1398, %v1474
          %v1491 = vmul.f32 %v1399, %v1475
          %v1492 = vmul.f32 %v1400, %v1476
          %v1493 = vmul.f32 %v1401, %v1477
          %v1494 = vmul.f32 %v1402, %v1478
          %v1495 = vmul.f32 %v1403, %v1479
          %v1496 = vmul.f32 %v1404, %v1480
          %v1497 = vmul.f32 %v1405, %v1481
          %v1498 = vmul.f32 %v1406, %v1482
          %v1499 = vmul.f32 %v1407, %v1483
          %v1500 = vmul.f32 %v1408, %v1484
          %v1501 = vmul.f32 %v1409, %v1485
          %v1502 = vmul.f32 %v1410, %v1486
          %v1503 = vmul.f32 %v1411, %v1487
          %v1504 = vmul.f32 %v1412, %v1488
          %v1505 = vshra.s32 %v1233, 5
          %v1506 = vshra.s32 %v1234, 5
          %v1507 = vshra.s32 %v1235, 5
          %v1508 = vshra.s32 %v1236, 5
          %v1509 = vand.u32 %v1505, 1
          %v1510 = vand.u32 %v1506, 1
          %v1511 = vand.u32 %v1507, 1
          %v1512 = vand.u32 %v1508, 1
          %v1513 = vcvt.s32.f32 %v1509
          %v1514 = vcvt.s32.f32 %v1510
          %v1515 = vcvt.s32.f32 %v1511
          %v1516 = vcvt.s32.f32 %v1512
          %1517 = vset.pattern.permute.xlu0 3
          %1518 = vperm.xlu0 %1517, %v1228
          %v1519 = vpop.permute.xlu0 %1518
          %1521 = vset.pattern.permute.xlu0 3
          %1522 = vperm.xlu0 %1521, %v1229
          %v1523 = vpop.permute.xlu0 %1522
          %1525 = vset.pattern.permute.xlu0 3
          %1526 = vperm.xlu0 %1525, %v1230
          %v1527 = vpop.permute.xlu0 %1526
          %1529 = vset.pattern.permute.xlu0 3
          %1530 = vperm.xlu0 %1529, %v1231
          %v1531 = vpop.permute.xlu0 %1530
          %v1533 = vmul.f32 %v1519, %v1513
          %v1534 = vmul.f32 %v1519, %v1514
          %v1535 = vmul.f32 %v1519, %v1515
          %v1536 = vmul.f32 %v1519, %v1516
          %v1537 = vmul.f32 %v1523, %v1513
          %v1538 = vmul.f32 %v1523, %v1514
          %v1539 = vmul.f32 %v1523, %v1515
          %v1540 = vmul.f32 %v1523, %v1516
          %v1541 = vmul.f32 %v1527, %v1513
          %v1542 = vmul.f32 %v1527, %v1514
          %v1543 = vmul.f32 %v1527, %v1515
          %v1544 = vmul.f32 %v1527, %v1516
          %v1545 = vmul.f32 %v1531, %v1513
          %v1546 = vmul.f32 %v1531, %v1514
          %v1547 = vmul.f32 %v1531, %v1515
          %v1548 = vmul.f32 %v1531, %v1516
          %1549 = vset.pattern.permute.xlu0 3
          %1550 = vperm.xlu0 %1549, %v1224
          %v1551 = vpop.permute.xlu0 %1550
          %1553 = vset.pattern.permute.xlu0 3
          %1554 = vperm.xlu0 %1553, %v1225
          %v1555 = vpop.permute.xlu0 %1554
          %1557 = vset.pattern.permute.xlu0 3
          %1558 = vperm.xlu0 %1557, %v1226
          %v1559 = vpop.permute.xlu0 %1558
          %1561 = vset.pattern.permute.xlu0 3
          %1562 = vperm.xlu0 %1561, %v1227
          %v1563 = vpop.permute.xlu0 %1562
          %v1565 = vadd.f32 %v1551, %v1533
          %v1566 = vadd.f32 %v1551, %v1534
          %v1567 = vadd.f32 %v1551, %v1535
          %v1568 = vadd.f32 %v1551, %v1536
          %v1569 = vadd.f32 %v1555, %v1537
          %v1570 = vadd.f32 %v1555, %v1538
          %v1571 = vadd.f32 %v1555, %v1539
          %v1572 = vadd.f32 %v1555, %v1540
          %v1573 = vadd.f32 %v1559, %v1541
          %v1574 = vadd.f32 %v1559, %v1542
          %v1575 = vadd.f32 %v1559, %v1543
          %v1576 = vadd.f32 %v1559, %v1544
          %v1577 = vadd.f32 %v1563, %v1545
          %v1578 = vadd.f32 %v1563, %v1546
          %v1579 = vadd.f32 %v1563, %v1547
          %v1580 = vadd.f32 %v1563, %v1548
          %v1581 = vmul.f32 %v1489, %v1565
          %v1582 = vmul.f32 %v1490, %v1566
          %v1583 = vmul.f32 %v1491, %v1567
          %v1584 = vmul.f32 %v1492, %v1568
          %v1585 = vmul.f32 %v1493, %v1569
          %v1586 = vmul.f32 %v1494, %v1570
          %v1587 = vmul.f32 %v1495, %v1571
          %v1588 = vmul.f32 %v1496, %v1572
          %v1589 = vmul.f32 %v1497, %v1573
          %v1590 = vmul.f32 %v1498, %v1574
          %v1591 = vmul.f32 %v1499, %v1575
          %v1592 = vmul.f32 %v1500, %v1576
          %v1593 = vmul.f32 %v1501, %v1577
          %v1594 = vmul.f32 %v1502, %v1578
          %v1595 = vmul.f32 %v1503, %v1579
          %v1596 = vmul.f32 %v1504, %v1580
          %v1597 = vshra.s32 %v1233, 4
          %v1598 = vshra.s32 %v1234, 4
          %v1599 = vshra.s32 %v1235, 4
          %v1600 = vshra.s32 %v1236, 4
          %v1601 = vand.u32 %v1597, 1
          %v1602 = vand.u32 %v1598, 1
          %v1603 = vand.u32 %v1599, 1
          %v1604 = vand.u32 %v1600, 1
          %v1605 = vcvt.s32.f32 %v1601
          %v1606 = vcvt.s32.f32 %v1602
          %v1607 = vcvt.s32.f32 %v1603
          %v1608 = vcvt.s32.f32 %v1604
          %1609 = vset.pattern.permute.xlu0 4
          %1610 = vperm.xlu0 %1609, %v1228
          %v1611 = vpop.permute.xlu0 %1610
          %1613 = vset.pattern.permute.xlu0 4
          %1614 = vperm.xlu0 %1613, %v1229
          %v1615 = vpop.permute.xlu0 %1614
          %1617 = vset.pattern.permute.xlu0 4
          %1618 = vperm.xlu0 %1617, %v1230
          %v1619 = vpop.permute.xlu0 %1618
          %1621 = vset.pattern.permute.xlu0 4
          %1622 = vperm.xlu0 %1621, %v1231
          %v1623 = vpop.permute.xlu0 %1622
          %v1625 = vmul.f32 %v1611, %v1605
          %v1626 = vmul.f32 %v1611, %v1606
          %v1627 = vmul.f32 %v1611, %v1607
          %v1628 = vmul.f32 %v1611, %v1608
          %v1629 = vmul.f32 %v1615, %v1605
          %v1630 = vmul.f32 %v1615, %v1606
          %v1631 = vmul.f32 %v1615, %v1607
          %v1632 = vmul.f32 %v1615, %v1608
          %v1633 = vmul.f32 %v1619, %v1605
          %v1634 = vmul.f32 %v1619, %v1606
          %v1635 = vmul.f32 %v1619, %v1607
          %v1636 = vmul.f32 %v1619, %v1608
          %v1637 = vmul.f32 %v1623, %v1605
          %v1638 = vmul.f32 %v1623, %v1606
          %v1639 = vmul.f32 %v1623, %v1607
          %v1640 = vmul.f32 %v1623, %v1608
          %1641 = vset.pattern.permute.xlu0 4
          %1642 = vperm.xlu0 %1641, %v1224
          %v1643 = vpop.permute.xlu0 %1642
          %1645 = vset.pattern.permute.xlu0 4
          %1646 = vperm.xlu0 %1645, %v1225
          %v1647 = vpop.permute.xlu0 %1646
          %1649 = vset.pattern.permute.xlu0 4
          %1650 = vperm.xlu0 %1649, %v1226
          %v1651 = vpop.permute.xlu0 %1650
          %1653 = vset.pattern.permute.xlu0 4
          %1654 = vperm.xlu0 %1653, %v1227
          %v1655 = vpop.permute.xlu0 %1654
          %v1657 = vadd.f32 %v1643, %v1625
          %v1658 = vadd.f32 %v1643, %v1626
          %v1659 = vadd.f32 %v1643, %v1627
          %v1660 = vadd.f32 %v1643, %v1628
          %v1661 = vadd.f32 %v1647, %v1629
          %v1662 = vadd.f32 %v1647, %v1630
          %v1663 = vadd.f32 %v1647, %v1631
          %v1664 = vadd.f32 %v1647, %v1632
          %v1665 = vadd.f32 %v1651, %v1633
          %v1666 = vadd.f32 %v1651, %v1634
          %v1667 = vadd.f32 %v1651, %v1635
          %v1668 = vadd.f32 %v1651, %v1636
          %v1669 = vadd.f32 %v1655, %v1637
          %v1670 = vadd.f32 %v1655, %v1638
          %v1671 = vadd.f32 %v1655, %v1639
          %v1672 = vadd.f32 %v1655, %v1640
          %v1673 = vmul.f32 %v1581, %v1657
          %v1674 = vmul.f32 %v1582, %v1658
          %v1675 = vmul.f32 %v1583, %v1659
          %v1676 = vmul.f32 %v1584, %v1660
          %v1677 = vmul.f32 %v1585, %v1661
          %v1678 = vmul.f32 %v1586, %v1662
          %v1679 = vmul.f32 %v1587, %v1663
          %v1680 = vmul.f32 %v1588, %v1664
          %v1681 = vmul.f32 %v1589, %v1665
          %v1682 = vmul.f32 %v1590, %v1666
          %v1683 = vmul.f32 %v1591, %v1667
          %v1684 = vmul.f32 %v1592, %v1668
          %v1685 = vmul.f32 %v1593, %v1669
          %v1686 = vmul.f32 %v1594, %v1670
          %v1687 = vmul.f32 %v1595, %v1671
          %v1688 = vmul.f32 %v1596, %v1672
          %v1689 = vshra.s32 %v1233, 3
          %v1690 = vshra.s32 %v1234, 3
          %v1691 = vshra.s32 %v1235, 3
          %v1692 = vshra.s32 %v1236, 3
          %v1693 = vand.u32 %v1689, 1
          %v1694 = vand.u32 %v1690, 1
          %v1695 = vand.u32 %v1691, 1
          %v1696 = vand.u32 %v1692, 1
          %v1697 = vcvt.s32.f32 %v1693
          %v1698 = vcvt.s32.f32 %v1694
          %v1699 = vcvt.s32.f32 %v1695
          %v1700 = vcvt.s32.f32 %v1696
          %1701 = vset.pattern.permute.xlu0 5
          %1702 = vperm.xlu0 %1701, %v1228
          %v1703 = vpop.permute.xlu0 %1702
          %1705 = vset.pattern.permute.xlu0 5
          %1706 = vperm.xlu0 %1705, %v1229
          %v1707 = vpop.permute.xlu0 %1706
          %1709 = vset.pattern.permute.xlu0 5
          %1710 = vperm.xlu0 %1709, %v1230
          %v1711 = vpop.permute.xlu0 %1710
          %1713 = vset.pattern.permute.xlu0 5
          %1714 = vperm.xlu0 %1713, %v1231
          %v1715 = vpop.permute.xlu0 %1714
          %v1717 = vmul.f32 %v1703, %v1697
          %v1718 = vmul.f32 %v1703, %v1698
          %v1719 = vmul.f32 %v1703, %v1699
          %v1720 = vmul.f32 %v1703, %v1700
          %v1721 = vmul.f32 %v1707, %v1697
          %v1722 = vmul.f32 %v1707, %v1698
          %v1723 = vmul.f32 %v1707, %v1699
          %v1724 = vmul.f32 %v1707, %v1700
          %v1725 = vmul.f32 %v1711, %v1697
          %v1726 = vmul.f32 %v1711, %v1698
          %v1727 = vmul.f32 %v1711, %v1699
          %v1728 = vmul.f32 %v1711, %v1700
          %v1729 = vmul.f32 %v1715, %v1697
          %v1730 = vmul.f32 %v1715, %v1698
          %v1731 = vmul.f32 %v1715, %v1699
          %v1732 = vmul.f32 %v1715, %v1700
          %1733 = vset.pattern.permute.xlu0 5
          %1734 = vperm.xlu0 %1733, %v1224
          %v1735 = vpop.permute.xlu0 %1734
          %1737 = vset.pattern.permute.xlu0 5
          %1738 = vperm.xlu0 %1737, %v1225
          %v1739 = vpop.permute.xlu0 %1738
          %1741 = vset.pattern.permute.xlu0 5
          %1742 = vperm.xlu0 %1741, %v1226
          %v1743 = vpop.permute.xlu0 %1742
          %1745 = vset.pattern.permute.xlu0 5
          %1746 = vperm.xlu0 %1745, %v1227
          %v1747 = vpop.permute.xlu0 %1746
          %v1749 = vadd.f32 %v1735, %v1717
          %v1750 = vadd.f32 %v1735, %v1718
          %v1751 = vadd.f32 %v1735, %v1719
          %v1752 = vadd.f32 %v1735, %v1720
          %v1753 = vadd.f32 %v1739, %v1721
          %v1754 = vadd.f32 %v1739, %v1722
          %v1755 = vadd.f32 %v1739, %v1723
          %v1756 = vadd.f32 %v1739, %v1724
          %v1757 = vadd.f32 %v1743, %v1725
          %v1758 = vadd.f32 %v1743, %v1726
          %v1759 = vadd.f32 %v1743, %v1727
          %v1760 = vadd.f32 %v1743, %v1728
          %v1761 = vadd.f32 %v1747, %v1729
          %v1762 = vadd.f32 %v1747, %v1730
          %v1763 = vadd.f32 %v1747, %v1731
          %v1764 = vadd.f32 %v1747, %v1732
          %v1765 = vmul.f32 %v1673, %v1749
          %v1766 = vmul.f32 %v1674, %v1750
          %v1767 = vmul.f32 %v1675, %v1751
          %v1768 = vmul.f32 %v1676, %v1752
          %v1769 = vmul.f32 %v1677, %v1753
          %v1770 = vmul.f32 %v1678, %v1754
          %v1771 = vmul.f32 %v1679, %v1755
          %v1772 = vmul.f32 %v1680, %v1756
          %v1773 = vmul.f32 %v1681, %v1757
          %v1774 = vmul.f32 %v1682, %v1758
          %v1775 = vmul.f32 %v1683, %v1759
          %v1776 = vmul.f32 %v1684, %v1760
          %v1777 = vmul.f32 %v1685, %v1761
          %v1778 = vmul.f32 %v1686, %v1762
          %v1779 = vmul.f32 %v1687, %v1763
          %v1780 = vmul.f32 %v1688, %v1764
          %v1781 = vshra.s32 %v1233, 2
          %v1782 = vshra.s32 %v1234, 2
          %v1783 = vshra.s32 %v1235, 2
          %v1784 = vshra.s32 %v1236, 2
          %v1785 = vand.u32 %v1781, 1
          %v1786 = vand.u32 %v1782, 1
          %v1787 = vand.u32 %v1783, 1
          %v1788 = vand.u32 %v1784, 1
          %v1789 = vcvt.s32.f32 %v1785
          %v1790 = vcvt.s32.f32 %v1786
          %v1791 = vcvt.s32.f32 %v1787
          %v1792 = vcvt.s32.f32 %v1788
          %1793 = vset.pattern.permute.xlu0 6
          %1794 = vperm.xlu0 %1793, %v1228
          %v1795 = vpop.permute.xlu0 %1794
          %1797 = vset.pattern.permute.xlu0 6
          %1798 = vperm.xlu0 %1797, %v1229
          %v1799 = vpop.permute.xlu0 %1798
          %1801 = vset.pattern.permute.xlu0 6
          %1802 = vperm.xlu0 %1801, %v1230
          %v1803 = vpop.permute.xlu0 %1802
          %1805 = vset.pattern.permute.xlu0 6
          %1806 = vperm.xlu0 %1805, %v1231
          %v1807 = vpop.permute.xlu0 %1806
          %v1809 = vmul.f32 %v1795, %v1789
          %v1810 = vmul.f32 %v1795, %v1790
          %v1811 = vmul.f32 %v1795, %v1791
          %v1812 = vmul.f32 %v1795, %v1792
          %v1813 = vmul.f32 %v1799, %v1789
          %v1814 = vmul.f32 %v1799, %v1790
          %v1815 = vmul.f32 %v1799, %v1791
          %v1816 = vmul.f32 %v1799, %v1792
          %v1817 = vmul.f32 %v1803, %v1789
          %v1818 = vmul.f32 %v1803, %v1790
          %v1819 = vmul.f32 %v1803, %v1791
          %v1820 = vmul.f32 %v1803, %v1792
          %v1821 = vmul.f32 %v1807, %v1789
          %v1822 = vmul.f32 %v1807, %v1790
          %v1823 = vmul.f32 %v1807, %v1791
          %v1824 = vmul.f32 %v1807, %v1792
          %1825 = vset.pattern.permute.xlu0 6
          %1826 = vperm.xlu0 %1825, %v1224
          %v1827 = vpop.permute.xlu0 %1826
          %1829 = vset.pattern.permute.xlu0 6
          %1830 = vperm.xlu0 %1829, %v1225
          %v1831 = vpop.permute.xlu0 %1830
          %1833 = vset.pattern.permute.xlu0 6
          %1834 = vperm.xlu0 %1833, %v1226
          %v1835 = vpop.permute.xlu0 %1834
          %1837 = vset.pattern.permute.xlu0 6
          %1838 = vperm.xlu0 %1837, %v1227
          %v1839 = vpop.permute.xlu0 %1838
          %v1841 = vadd.f32 %v1827, %v1809
          %v1842 = vadd.f32 %v1827, %v1810
          %v1843 = vadd.f32 %v1827, %v1811
          %v1844 = vadd.f32 %v1827, %v1812
          %v1845 = vadd.f32 %v1831, %v1813
          %v1846 = vadd.f32 %v1831, %v1814
          %v1847 = vadd.f32 %v1831, %v1815
          %v1848 = vadd.f32 %v1831, %v1816
          %v1849 = vadd.f32 %v1835, %v1817
          %v1850 = vadd.f32 %v1835, %v1818
          %v1851 = vadd.f32 %v1835, %v1819
          %v1852 = vadd.f32 %v1835, %v1820
          %v1853 = vadd.f32 %v1839, %v1821
          %v1854 = vadd.f32 %v1839, %v1822
          %v1855 = vadd.f32 %v1839, %v1823
          %v1856 = vadd.f32 %v1839, %v1824
          %v1857 = vmul.f32 %v1765, %v1841
          %v1858 = vmul.f32 %v1766, %v1842
          %v1859 = vmul.f32 %v1767, %v1843
          %v1860 = vmul.f32 %v1768, %v1844
          %v1861 = vmul.f32 %v1769, %v1845
          %v1862 = vmul.f32 %v1770, %v1846
          %v1863 = vmul.f32 %v1771, %v1847
          %v1864 = vmul.f32 %v1772, %v1848
          %v1865 = vmul.f32 %v1773, %v1849
          %v1866 = vmul.f32 %v1774, %v1850
          %v1867 = vmul.f32 %v1775, %v1851
          %v1868 = vmul.f32 %v1776, %v1852
          %v1869 = vmul.f32 %v1777, %v1853
          %v1870 = vmul.f32 %v1778, %v1854
          %v1871 = vmul.f32 %v1779, %v1855
          %v1872 = vmul.f32 %v1780, %v1856
          %v1873 = vshra.s32 %v1233, 1
          %v1874 = vshra.s32 %v1234, 1
          %v1875 = vshra.s32 %v1235, 1
          %v1876 = vshra.s32 %v1236, 1
          %v1877 = vand.u32 %v1873, 1
          %v1878 = vand.u32 %v1874, 1
          %v1879 = vand.u32 %v1875, 1
          %v1880 = vand.u32 %v1876, 1
          %v1881 = vcvt.s32.f32 %v1877
          %v1882 = vcvt.s32.f32 %v1878
          %v1883 = vcvt.s32.f32 %v1879
          %v1884 = vcvt.s32.f32 %v1880
          %1885 = vset.pattern.permute.xlu0 7
          %1886 = vperm.xlu0 %1885, %v1228
          %v1887 = vpop.permute.xlu0 %1886
          %1889 = vset.pattern.permute.xlu0 7
          %1890 = vperm.xlu0 %1889, %v1229
          %v1891 = vpop.permute.xlu0 %1890
          %1893 = vset.pattern.permute.xlu0 7
          %1894 = vperm.xlu0 %1893, %v1230
          %v1895 = vpop.permute.xlu0 %1894
          %1897 = vset.pattern.permute.xlu0 7
          %1898 = vperm.xlu0 %1897, %v1231
          %v1899 = vpop.permute.xlu0 %1898
          %v1901 = vmul.f32 %v1887, %v1881
          %v1902 = vmul.f32 %v1887, %v1882
          %v1903 = vmul.f32 %v1887, %v1883
          %v1904 = vmul.f32 %v1887, %v1884
          %v1905 = vmul.f32 %v1891, %v1881
          %v1906 = vmul.f32 %v1891, %v1882
          %v1907 = vmul.f32 %v1891, %v1883
          %v1908 = vmul.f32 %v1891, %v1884
          %v1909 = vmul.f32 %v1895, %v1881
          %v1910 = vmul.f32 %v1895, %v1882
          %v1911 = vmul.f32 %v1895, %v1883
          %v1912 = vmul.f32 %v1895, %v1884
          %v1913 = vmul.f32 %v1899, %v1881
          %v1914 = vmul.f32 %v1899, %v1882
          %v1915 = vmul.f32 %v1899, %v1883
          %v1916 = vmul.f32 %v1899, %v1884
          %1917 = vset.pattern.permute.xlu0 7
          %1918 = vperm.xlu0 %1917, %v1224
          %v1919 = vpop.permute.xlu0 %1918
          %1921 = vset.pattern.permute.xlu0 7
          %1922 = vperm.xlu0 %1921, %v1225
          %v1923 = vpop.permute.xlu0 %1922
          %1925 = vset.pattern.permute.xlu0 7
          %1926 = vperm.xlu0 %1925, %v1226
          %v1927 = vpop.permute.xlu0 %1926
          %1929 = vset.pattern.permute.xlu0 7
          %1930 = vperm.xlu0 %1929, %v1227
          %v1931 = vpop.permute.xlu0 %1930
          %v1933 = vadd.f32 %v1919, %v1901
          %v1934 = vadd.f32 %v1919, %v1902
          %v1935 = vadd.f32 %v1919, %v1903
          %v1936 = vadd.f32 %v1919, %v1904
          %v1937 = vadd.f32 %v1923, %v1905
          %v1938 = vadd.f32 %v1923, %v1906
          %v1939 = vadd.f32 %v1923, %v1907
          %v1940 = vadd.f32 %v1923, %v1908
          %v1941 = vadd.f32 %v1927, %v1909
          %v1942 = vadd.f32 %v1927, %v1910
          %v1943 = vadd.f32 %v1927, %v1911
          %v1944 = vadd.f32 %v1927, %v1912
          %v1945 = vadd.f32 %v1931, %v1913
          %v1946 = vadd.f32 %v1931, %v1914
          %v1947 = vadd.f32 %v1931, %v1915
          %v1948 = vadd.f32 %v1931, %v1916
          %v1949 = vmul.f32 %v1857, %v1933
          %v1950 = vmul.f32 %v1858, %v1934
          %v1951 = vmul.f32 %v1859, %v1935
          %v1952 = vmul.f32 %v1860, %v1936
          %v1953 = vmul.f32 %v1861, %v1937
          %v1954 = vmul.f32 %v1862, %v1938
          %v1955 = vmul.f32 %v1863, %v1939
          %v1956 = vmul.f32 %v1864, %v1940
          %v1957 = vmul.f32 %v1865, %v1941
          %v1958 = vmul.f32 %v1866, %v1942
          %v1959 = vmul.f32 %v1867, %v1943
          %v1960 = vmul.f32 %v1868, %v1944
          %v1961 = vmul.f32 %v1869, %v1945
          %v1962 = vmul.f32 %v1870, %v1946
          %v1963 = vmul.f32 %v1871, %v1947
          %v1964 = vmul.f32 %v1872, %v1948
          %v1965 = vand.u32 %v1233, 1
          %v1966 = vand.u32 %v1234, 1
          %v1967 = vand.u32 %v1235, 1
          %v1968 = vand.u32 %v1236, 1
          %v1969 = vcvt.s32.f32 %v1965
          %v1970 = vcvt.s32.f32 %v1966
          %v1971 = vcvt.s32.f32 %v1967
          %v1972 = vcvt.s32.f32 %v1968
          %1973 = vset.pattern.permute.xlu0 8
          %1974 = vperm.xlu0 %1973, %v1228
          %v1975 = vpop.permute.xlu0 %1974
          %1977 = vset.pattern.permute.xlu0 8
          %1978 = vperm.xlu0 %1977, %v1229
          %v1979 = vpop.permute.xlu0 %1978
          %1981 = vset.pattern.permute.xlu0 8
          %1982 = vperm.xlu0 %1981, %v1230
          %v1983 = vpop.permute.xlu0 %1982
          %1985 = vset.pattern.permute.xlu0 8
          %1986 = vperm.xlu0 %1985, %v1231
          %v1987 = vpop.permute.xlu0 %1986
          %v1989 = vmul.f32 %v1975, %v1969
          %v1990 = vmul.f32 %v1975, %v1970
          %v1991 = vmul.f32 %v1975, %v1971
          %v1992 = vmul.f32 %v1975, %v1972
          %v1993 = vmul.f32 %v1979, %v1969
          %v1994 = vmul.f32 %v1979, %v1970
          %v1995 = vmul.f32 %v1979, %v1971
          %v1996 = vmul.f32 %v1979, %v1972
          %v1997 = vmul.f32 %v1983, %v1969
          %v1998 = vmul.f32 %v1983, %v1970
          %v1999 = vmul.f32 %v1983, %v1971
          %v2000 = vmul.f32 %v1983, %v1972
          %v2001 = vmul.f32 %v1987, %v1969
          %v2002 = vmul.f32 %v1987, %v1970
          %v2003 = vmul.f32 %v1987, %v1971
          %v2004 = vmul.f32 %v1987, %v1972
          %2005 = vset.pattern.permute.xlu0 8
          %2006 = vperm.xlu0 %2005, %v1224
          %v2007 = vpop.permute.xlu0 %2006
          %2009 = vset.pattern.permute.xlu0 8
          %2010 = vperm.xlu0 %2009, %v1225
          %v2011 = vpop.permute.xlu0 %2010
          %2013 = vset.pattern.permute.xlu0 8
          %2014 = vperm.xlu0 %2013, %v1226
          %v2015 = vpop.permute.xlu0 %2014
          %2017 = vset.pattern.permute.xlu0 8
          %2018 = vperm.xlu0 %2017, %v1227
          %v2019 = vpop.permute.xlu0 %2018
          %v2021 = vadd.f32 %v2007, %v1989
          %v2022 = vadd.f32 %v2007, %v1990
          %v2023 = vadd.f32 %v2007, %v1991
          %v2024 = vadd.f32 %v2007, %v1992
          %v2025 = vadd.f32 %v2011, %v1993
          %v2026 = vadd.f32 %v2011, %v1994
          %v2027 = vadd.f32 %v2011, %v1995
          %v2028 = vadd.f32 %v2011, %v1996
          %v2029 = vadd.f32 %v2015, %v1997
          %v2030 = vadd.f32 %v2015, %v1998
          %v2031 = vadd.f32 %v2015, %v1999
          %v2032 = vadd.f32 %v2015, %v2000
          %v2033 = vadd.f32 %v2019, %v2001
          %v2034 = vadd.f32 %v2019, %v2002
          %v2035 = vadd.f32 %v2019, %v2003
          %v2036 = vadd.f32 %v2019, %v2004
          %v2037 = vmul.f32 %v1949, %v2021
          %v2038 = vmul.f32 %v1950, %v2022
          %v2039 = vmul.f32 %v1951, %v2023
          %v2040 = vmul.f32 %v1952, %v2024
          %v2041 = vmul.f32 %v1953, %v2025
          %v2042 = vmul.f32 %v1954, %v2026
          %v2043 = vmul.f32 %v1955, %v2027
          %v2044 = vmul.f32 %v1956, %v2028
          %v2045 = vmul.f32 %v1957, %v2029
          %v2046 = vmul.f32 %v1958, %v2030
          %v2047 = vmul.f32 %v1959, %v2031
          %v2048 = vmul.f32 %v1960, %v2032
          %v2049 = vmul.f32 %v1961, %v2033
          %v2050 = vmul.f32 %v1962, %v2034
          %v2051 = vmul.f32 %v1963, %v2035
          %v2052 = vmul.f32 %v1964, %v2036
          %v2053 = vpack.c.bf16 %v2041, %v2037
          %v2054 = vpack.c.bf16 %v2042, %v2038
          %v2055 = vpack.c.bf16 %v2043, %v2039
          %v2056 = vpack.c.bf16 %v2044, %v2040
          %v2057 = vpack.c.bf16 %v2049, %v2045
          %v2058 = vpack.c.bf16 %v2050, %v2046
          %v2059 = vpack.c.bf16 %v2051, %v2047
          %v2060 = vpack.c.bf16 %v2052, %v2048
          %2061 = vst [vmem:[#allocation2] sm:$0xff] %v2053
          %2062 = vst [vmem:[#allocation2 + $0x8] sm:$0xff] %v2054
          %2063 = vst [vmem:[#allocation2 + $0x10] sm:$0xff] %v2055
          %2064 = vst [vmem:[#allocation2 + $0x18] sm:$0xff] %v2056
          %2065 = vst [vmem:[#allocation2 + $0x20] sm:$0xff] %v2057
          %2066 = vst [vmem:[#allocation2 + $0x28] sm:$0xff] %v2058
          %2067 = vst [vmem:[#allocation2 + $0x30] sm:$0xff] %v2059
          %2068 = vst [vmem:[#allocation2 + $0x38] sm:$0xff] %v2060
          %vm2069 = vcmask 72704
          %2070 = vst.msk [vmem:[%s4] sm:$0xff] %vm2069, 0.0
          %2071 = vst.msk [vmem:[%s4 + $0x8] sm:$0xff] %vm2069, 0.0
          %2072 = vst.msk [vmem:[%s4 + $0x10] sm:$0xff] %vm2069, 0.0
          %2073 = vst.msk [vmem:[%s4 + $0x18] sm:$0xff] %vm2069, 0.0
        $region56: #{tpu_custom_call.1} parent=35 // pred_fallthru
          _
        %v2074 = vld [vmem:[#allocation2] sm:$0xff]
        %v2075 = vld [vmem:[#allocation2 + $0x8] sm:$0xff]
        %v2076 = vld [vmem:[#allocation2 + $0x10] sm:$0xff]
        %v2077 = vld [vmem:[#allocation2 + $0x18] sm:$0xff]
        %v2078 = vld [vmem:[#allocation2 + $0x20] sm:$0xff]
        %v2079 = vld [vmem:[#allocation2 + $0x28] sm:$0xff]
        %v2080 = vld [vmem:[#allocation2 + $0x30] sm:$0xff]
        %v2081 = vld [vmem:[#allocation2 + $0x38] sm:$0xff]
        %v2082 = vld [vmem:[%s231] sm:$0xf]
        %v2083 = vld [vmem:[%s231 + $0x4] sm:$0xf]
        %v2084 = vld [vmem:[%s231 + $0x8] sm:$0xf]
        %v2085 = vld [vmem:[%s231 + $0xc] sm:$0xf]
        %v2086 = vld [vmem:[%s231 + $0x10] sm:$0xf]
        %v2087 = vld [vmem:[%s231 + $0x14] sm:$0xf]
        %v2088 = vld [vmem:[%s231 + $0x18] sm:$0xf]
        %v2089 = vld [vmem:[%s231 + $0x1c] sm:$0xf]
        %v2090 = vld [vmem:[%s231 + $0x20] sm:$0xf]
        %v2091 = vld [vmem:[%s231 + $0x24] sm:$0xf]
        %v2092 = vld [vmem:[%s231 + $0x28] sm:$0xf]
        %v2093 = vld [vmem:[%s231 + $0x2c] sm:$0xf]
        %v2094 = vld [vmem:[%s231 + $0x30] sm:$0xf]
        %v2095 = vld [vmem:[%s231 + $0x34] sm:$0xf]
        %v2096 = vld [vmem:[%s231 + $0x38] sm:$0xf]
        %v2097 = vld [vmem:[%s231 + $0x3c] sm:$0xf]
        %v2098 = vld [vmem:[%s231 + $0x40] sm:$0xf]
        %v2099 = vld [vmem:[%s231 + $0x44] sm:$0xf]
        %v2100 = vld [vmem:[%s231 + $0x48] sm:$0xf]
        %v2101 = vld [vmem:[%s231 + $0x4c] sm:$0xf]
        %v2102 = vld [vmem:[%s231 + $0x50] sm:$0xf]
        %v2103 = vld [vmem:[%s231 + $0x54] sm:$0xf]
        %v2104 = vld [vmem:[%s231 + $0x58] sm:$0xf]
        %v2105 = vld [vmem:[%s231 + $0x5c] sm:$0xf]
        %v2106 = vld [vmem:[%s231 + $0x60] sm:$0xf]
        %v2107 = vld [vmem:[%s231 + $0x64] sm:$0xf]
        %v2108 = vld [vmem:[%s231 + $0x68] sm:$0xf]
        %v2109 = vld [vmem:[%s231 + $0x6c] sm:$0xf]
        %v2110 = vld [vmem:[%s231 + $0x70] sm:$0xf]
        %v2111 = vld [vmem:[%s231 + $0x74] sm:$0xf]
        %v2112 = vld [vmem:[%s231 + $0x78] sm:$0xf]
        %v2113 = vld [vmem:[%s231 + $0x7c] sm:$0xf]
        %v2114 = vld [vmem:[%s231 + $0x80] sm:$0xf]
        %v2115 = vld [vmem:[%s231 + $0x84] sm:$0xf]
        %v2116 = vld [vmem:[%s231 + $0x88] sm:$0xf]
        %v2117 = vld [vmem:[%s231 + $0x8c] sm:$0xf]
        %v2118 = vld [vmem:[%s231 + $0x90] sm:$0xf]
        %v2119 = vld [vmem:[%s231 + $0x94] sm:$0xf]
        %v2120 = vld [vmem:[%s231 + $0x98] sm:$0xf]
        %v2121 = vld [vmem:[%s231 + $0x9c] sm:$0xf]
        %v2122 = vld [vmem:[%s231 + $0xa0] sm:$0xf]
        %v2123 = vld [vmem:[%s231 + $0xa4] sm:$0xf]
        %v2124 = vld [vmem:[%s231 + $0xa8] sm:$0xf]
        %v2125 = vld [vmem:[%s231 + $0xac] sm:$0xf]
        %v2126 = vld [vmem:[%s231 + $0xb0] sm:$0xf]
        %v2127 = vld [vmem:[%s231 + $0xb4] sm:$0xf]
        %v2128 = vld [vmem:[%s231 + $0xb8] sm:$0xf]
        %v2129 = vld [vmem:[%s231 + $0xbc] sm:$0xf]
        %v2130 = vld [vmem:[%s231 + $0xc0] sm:$0xf]
        %v2131 = vld [vmem:[%s231 + $0xc4] sm:$0xf]
        %v2132 = vld [vmem:[%s231 + $0xc8] sm:$0xf]
        %v2133 = vld [vmem:[%s231 + $0xcc] sm:$0xf]
        %v2134 = vld [vmem:[%s231 + $0xd0] sm:$0xf]
        %v2135 = vld [vmem:[%s231 + $0xd4] sm:$0xf]
        %v2136 = vld [vmem:[%s231 + $0xd8] sm:$0xf]
        %v2137 = vld [vmem:[%s231 + $0xdc] sm:$0xf]
        %v2138 = vld [vmem:[%s231 + $0xe0] sm:$0xf]
        %v2139 = vld [vmem:[%s231 + $0xe4] sm:$0xf]
        %v2140 = vld [vmem:[%s231 + $0xe8] sm:$0xf]
        %v2141 = vld [vmem:[%s231 + $0xec] sm:$0xf]
        %v2142 = vld [vmem:[%s231 + $0xf0] sm:$0xf]
        %v2143 = vld [vmem:[%s231 + $0xf4] sm:$0xf]
        %v2144 = vld [vmem:[%s231 + $0xf8] sm:$0xf]
        %v2145 = vld [vmem:[%s231 + $0xfc] sm:$0xf]
        %v2210 = vunpack.c.l.b16 %v2082
        %v2211 = vunpack.c.l.b16 %v2083
        %v2212 = vunpack.c.l.b16 %v2084
        %v2213 = vunpack.c.l.b16 %v2085
        %v2214 = vunpack.c.l.b16 %v2086
        %v2215 = vunpack.c.l.b16 %v2087
        %v2216 = vunpack.c.l.b16 %v2088
        %v2217 = vunpack.c.l.b16 %v2089
        %v2218 = vunpack.c.l.b16 %v2090
        %v2219 = vunpack.c.l.b16 %v2091
        %v2220 = vunpack.c.l.b16 %v2092
        %v2221 = vunpack.c.l.b16 %v2093
        %v2222 = vunpack.c.l.b16 %v2094
        %v2223 = vunpack.c.l.b16 %v2095
        %v2224 = vunpack.c.l.b16 %v2096
        %v2225 = vunpack.c.l.b16 %v2097
        %v2226 = vunpack.c.l.b16 %v2098
        %v2227 = vunpack.c.l.b16 %v2099
        %v2228 = vunpack.c.l.b16 %v2100
        %v2229 = vunpack.c.l.b16 %v2101
        %v2230 = vunpack.c.l.b16 %v2102
        %v2231 = vunpack.c.l.b16 %v2103
        %v2232 = vunpack.c.l.b16 %v2104
        %v2233 = vunpack.c.l.b16 %v2105
        %v2234 = vunpack.c.l.b16 %v2106
        %v2235 = vunpack.c.l.b16 %v2107
        %v2236 = vunpack.c.l.b16 %v2108
        %v2237 = vunpack.c.l.b16 %v2109
        %v2238 = vunpack.c.l.b16 %v2110
        %v2239 = vunpack.c.l.b16 %v2111
        %v2240 = vunpack.c.l.b16 %v2112
        %v2241 = vunpack.c.l.b16 %v2113
        %v2242 = vunpack.c.l.b16 %v2114
        %v2243 = vunpack.c.l.b16 %v2115
        %v2244 = vunpack.c.l.b16 %v2116
        %v2245 = vunpack.c.l.b16 %v2117
        %v2246 = vunpack.c.l.b16 %v2118
        %v2247 = vunpack.c.l.b16 %v2119
        %v2248 = vunpack.c.l.b16 %v2120
        %v2249 = vunpack.c.l.b16 %v2121
        %v2250 = vunpack.c.l.b16 %v2122
        %v2251 = vunpack.c.l.b16 %v2123
        %v2252 = vunpack.c.l.b16 %v2124
        %v2253 = vunpack.c.l.b16 %v2125
        %v2254 = vunpack.c.l.b16 %v2126
        %v2255 = vunpack.c.l.b16 %v2127
        %v2256 = vunpack.c.l.b16 %v2128
        %v2257 = vunpack.c.l.b16 %v2129
        %v2258 = vunpack.c.l.b16 %v2130
        %v2259 = vunpack.c.l.b16 %v2131
        %v2260 = vunpack.c.l.b16 %v2132
        %v2261 = vunpack.c.l.b16 %v2133
        %v2262 = vunpack.c.l.b16 %v2134
        %v2263 = vunpack.c.l.b16 %v2135
        %v2264 = vunpack.c.l.b16 %v2136
        %v2265 = vunpack.c.l.b16 %v2137
        %v2266 = vunpack.c.l.b16 %v2138
        %v2267 = vunpack.c.l.b16 %v2139
        %v2268 = vunpack.c.l.b16 %v2140
        %v2269 = vunpack.c.l.b16 %v2141
        %v2270 = vunpack.c.l.b16 %v2142
        %v2271 = vunpack.c.l.b16 %v2143
        %v2272 = vunpack.c.l.b16 %v2144
        %v2273 = vunpack.c.l.b16 %v2145
        %v2274 = vpack.c.b16 %v2211, %v2210
        %v2275 = vpack.c.b16 %v2213, %v2212
        %v2276 = vpack.c.b16 %v2215, %v2214
        %v2277 = vpack.c.b16 %v2217, %v2216
        %v2278 = vpack.c.b16 %v2219, %v2218
        %v2279 = vpack.c.b16 %v2221, %v2220
        %v2280 = vpack.c.b16 %v2223, %v2222
        %v2281 = vpack.c.b16 %v2225, %v2224
        %v2282 = vpack.c.b16 %v2227, %v2226
        %v2283 = vpack.c.b16 %v2229, %v2228
        %v2284 = vpack.c.b16 %v2231, %v2230
        %v2285 = vpack.c.b16 %v2233, %v2232
        %v2286 = vpack.c.b16 %v2235, %v2234
        %v2287 = vpack.c.b16 %v2237, %v2236
        %v2288 = vpack.c.b16 %v2239, %v2238
        %v2289 = vpack.c.b16 %v2241, %v2240
        %v2290 = vpack.c.b16 %v2243, %v2242
        %v2291 = vpack.c.b16 %v2245, %v2244
        %v2292 = vpack.c.b16 %v2247, %v2246
        %v2293 = vpack.c.b16 %v2249, %v2248
        %v2294 = vpack.c.b16 %v2251, %v2250
        %v2295 = vpack.c.b16 %v2253, %v2252
        %v2296 = vpack.c.b16 %v2255, %v2254
        %v2297 = vpack.c.b16 %v2257, %v2256
        %v2298 = vpack.c.b16 %v2259, %v2258
        %v2299 = vpack.c.b16 %v2261, %v2260
        %v2300 = vpack.c.b16 %v2263, %v2262
        %v2301 = vpack.c.b16 %v2265, %v2264
        %v2302 = vpack.c.b16 %v2267, %v2266
        %v2303 = vpack.c.b16 %v2269, %v2268
        %v2304 = vpack.c.b16 %v2271, %v2270
        %v2305 = vpack.c.b16 %v2273, %v2272
        %2338 = vmatprep.subr.bf16.mxu0 0
        %2339 = vmatpush1.bf16.msra.mxu0 %v2274
        %2340 = vmatprep.subr.bf16.mxu0 0
        %2341 = vmatpush1.bf16.msra.mxu0 %v2275
        %2342 = vmatprep.subr.bf16.mxu0 0
        %2343 = vmatpush1.bf16.msra.mxu0 %v2276
        %2344 = vmatprep.subr.bf16.mxu0 0
        %2345 = vmatpush1.bf16.msra.mxu0 %v2277
        %2346 = vmatprep.subr.bf16.mxu0 0
        %2347 = vmatpush1.bf16.msra.mxu0 %v2278
        %2348 = vmatprep.subr.bf16.mxu0 0
        %2349 = vmatpush1.bf16.msra.mxu0 %v2279
        %2350 = vmatprep.subr.bf16.mxu0 0
        %2351 = vmatpush1.bf16.msra.mxu0 %v2280
        %2352 = vmatprep.subr.bf16.mxu0 0
        %2353 = vmatpush1.bf16.msra.mxu0 %v2281
        %2354 = vmatprep.subr.bf16.mxu0 0
        %2355 = vmatpush1.bf16.msra.mxu0 %v2282
        %2356 = vmatprep.subr.bf16.mxu0 0
        %2357 = vmatpush1.bf16.msra.mxu0 %v2283
        %2358 = vmatprep.subr.bf16.mxu0 0
        %2359 = vmatpush1.bf16.msra.mxu0 %v2284
        %2360 = vmatprep.subr.bf16.mxu0 0
        %2361 = vmatpush1.bf16.msra.mxu0 %v2285
        %2362 = vmatprep.subr.bf16.mxu0 0
        %2363 = vmatpush1.bf16.msra.mxu0 %v2286
        %2364 = vmatprep.subr.bf16.mxu0 0
        %2365 = vmatpush1.bf16.msra.mxu0 %v2287
        %2366 = vmatprep.subr.bf16.mxu0 0
        %2367 = vmatpush1.bf16.msra.mxu0 %v2288
        %2368 = vmatprep.subr.bf16.mxu0 0
        %2369 = vmatpush1.bf16.msra.mxu0 %v2289
        %2370 = vmatprep.mubr.bf16.mxu0 %v2075
        %2371 = vmatmul.mubr.bf16.gmra.mrb[0].mxu0 %v2074
        %v2372 = vpop.f32.mrb[0].mxu0
        %v2373 = vadd.f32 0.0, %v2372
        %v2374 = vpop.f32.mrb[0].mxu0
        %v2375 = vpop.f32.mrb[0].mxu0
        %v2376 = vadd.f32 0.0, %v2375
        %v2377 = vpop.f32.mrb[0].mxu0
        %2378 = vmatprep.mubr.bf16.mxu0 %v2079
        %2379 = vmatmul.mubr.bf16.gmra.mrb[0].mxu0 %v2078
        %v2380 = vpop.f32.mrb[0].mxu0
        %v2381 = vadd.f32 0.0, %v2380
        %v2382 = vpop.f32.mrb[0].mxu0
        %v2383 = vpop.f32.mrb[0].mxu0
        %v2384 = vadd.f32 0.0, %v2383
        %v2385 = vpop.f32.mrb[0].mxu0
        %2386 = vdwg.mxu0
        %2387 = vmatprep.subr.bf16.mxu0 0
        %2388 = vmatpush1.bf16.msra.mxu0 %v2290
        %2389 = vmatprep.subr.bf16.mxu0 0
        %2390 = vmatpush1.bf16.msra.mxu0 %v2291
        %2391 = vmatprep.subr.bf16.mxu0 0
        %2392 = vmatpush1.bf16.msra.mxu0 %v2292
        %2393 = vmatprep.subr.bf16.mxu0 0
        %2394 = vmatpush1.bf16.msra.mxu0 %v2293
        %2395 = vmatprep.subr.bf16.mxu0 0
        %2396 = vmatpush1.bf16.msra.mxu0 %v2294
        %2397 = vmatprep.subr.bf16.mxu0 0
        %2398 = vmatpush1.bf16.msra.mxu0 %v2295
        %2399 = vmatprep.subr.bf16.mxu0 0
        %2400 = vmatpush1.bf16.msra.mxu0 %v2296
        %2401 = vmatprep.subr.bf16.mxu0 0
        %2402 = vmatpush1.bf16.msra.mxu0 %v2297
        %2403 = vmatprep.subr.bf16.mxu0 0
        %2404 = vmatpush1.bf16.msra.mxu0 %v2298
        %2405 = vmatprep.subr.bf16.mxu0 0
        %2406 = vmatpush1.bf16.msra.mxu0 %v2299
        %2407 = vmatprep.subr.bf16.mxu0 0
        %2408 = vmatpush1.bf16.msra.mxu0 %v2300
        %2409 = vmatprep.subr.bf16.mxu0 0
        %2410 = vmatpush1.bf16.msra.mxu0 %v2301
        %2411 = vmatprep.subr.bf16.mxu0 0
        %2412 = vmatpush1.bf16.msra.mxu0 %v2302
        %2413 = vmatprep.subr.bf16.mxu0 0
        %2414 = vmatpush1.bf16.msra.mxu0 %v2303
        %2415 = vmatprep.subr.bf16.mxu0 0
        %2416 = vmatpush1.bf16.msra.mxu0 %v2304
        %2417 = vmatprep.subr.bf16.mxu0 0
        %2418 = vmatpush1.bf16.msra.mxu0 %v2305
        %2419 = vmatprep.mubr.bf16.mxu0 %v2077
        %2420 = vmatmul.mubr.bf16.gmra.mrb[0].mxu0 %v2076
        %v2421 = vpop.f32.mrb[0].mxu0
        %v2422 = vadd.f32 %v2373, %v2421
        %v2423 = vpop.f32.mrb[0].mxu0
        %v2424 = vpop.f32.mrb[0].mxu0
        %v2425 = vadd.f32 %v2376, %v2424
        %v2426 = vpop.f32.mrb[0].mxu0
        %2427 = vmatprep.mubr.bf16.mxu0 %v2081
        %2428 = vmatmul.mubr.bf16.gmra.mrb[0].mxu0 %v2080
        %v2429 = vpop.f32.mrb[0].mxu0
        %v2430 = vadd.f32 %v2381, %v2429
        %v2431 = vpop.f32.mrb[0].mxu0
        %v2432 = vpop.f32.mrb[0].mxu0
        %v2433 = vadd.f32 %v2384, %v2432
        %v2434 = vpop.f32.mrb[0].mxu0
        %2435 = vdwg.mxu0
        %v2436 = vmul.f32 %v2422, %v2422
        %v2437 = vmul.f32 %v2425, %v2425
        %v2438 = vmul.f32 %v2430, %v2430
        %v2439 = vmul.f32 %v2433, %v2433
        %v2440 = vld [vmem:[%s4] sm:$0xff]
        %v2441 = vld [vmem:[%s4 + $0x8] sm:$0xff]
        %v2442 = vld [vmem:[%s4 + $0x10] sm:$0xff]
        %v2443 = vld [vmem:[%s4 + $0x18] sm:$0xff]
        %v2444 = vld [vmem:[%s240] sm:$0xff]
        %v2445 = vld [vmem:[%s240 + $0x8] sm:$0x1]
        %2446 = vmatprep.subr.mxu0 0.0
        %2447 = vmatpush1.xpose.msra.mxu0 %v2444
        %2448 = vmatprep.subr.mxu0 0.0
        %2449 = vmatpush1.xpose.msra.mxu0 %v2445
        %2450 = vmatprep.subr.mxu0 0.0
        %2451 = vmatpush1.xpose.msra.mxu0 0.0
        %2452 = vmatprep.subr.mxu0 0.0
        %2453 = vmatpush1.xpose.msra.mxu0 0.0
        %2454 = vmatprep.subr.mxu0 0.0
        %2455 = vmatpush1.xpose.msra.mxu0 0.0
        %2456 = vmatprep.subr.mxu0 0.0
        %2457 = vmatpush1.xpose.msra.mxu0 0.0
        %2458 = vmatprep.subr.mxu0 0.0
        %2459 = vmatpush1.xpose.msra.mxu0 0.0
        %2460 = vmatprep.subr.mxu0 0.0
        %2461 = vmatpush1.xpose.msra.mxu0 0.0
        %2462 = vmatprep.subr.mxu0 0.0
        %2463 = vmatpush1.xpose.msra.mxu0 0.0
        %2464 = vmatprep.subr.mxu0 0.0
        %2465 = vmatpush1.xpose.msra.mxu0 0.0
        %2466 = vmatprep.subr.mxu0 0.0
        %2467 = vmatpush1.xpose.msra.mxu0 0.0
        %2468 = vmatprep.subr.mxu0 0.0
        %2469 = vmatpush1.xpose.msra.mxu0 0.0
        %2470 = vmatprep.subr.mxu0 0.0
        %2471 = vmatpush1.xpose.msra.mxu0 0.0
        %2472 = vmatprep.subr.mxu0 0.0
        %2473 = vmatpush1.xpose.msra.mxu0 0.0
        %2474 = vmatprep.subr.mxu0 0.0
        %2475 = vmatpush1.xpose.msra.mxu0 0.0
        %2476 = vmatprep.subr.mxu0 0.0
        %2477 = vmatpush1.xpose.msra.mxu0 0.0
        %2478 = vmatprep.subr.mxu0 0.0
        %2479 = vmatpush1.xpose.msra.mxu0 0.0
        %2480 = vmatprep.subr.mxu0 0.0
        %2481 = vmatpush1.xpose.msra.mxu0 0.0
        %2482 = vmatprep.subr.mxu0 0.0
        %2483 = vmatpush1.xpose.msra.mxu0 0.0
        %2484 = vmatprep.subr.mxu0 0.0
        %2485 = vmatpush1.xpose.msra.mxu0 0.0
        %2486 = vmatprep.subr.mxu0 0.0
        %2487 = vmatpush1.xpose.msra.mxu0 0.0
        %2488 = vmatprep.subr.mxu0 0.0
        %2489 = vmatpush1.xpose.msra.mxu0 0.0
        %2490 = vmatprep.subr.mxu0 0.0
        %2491 = vmatpush1.xpose.msra.mxu0 0.0
        %2492 = vmatprep.subr.mxu0 0.0
        %2493 = vmatpush1.xpose.msra.mxu0 0.0
        %2494 = vmatprep.subr.mxu0 0.0
        %2495 = vmatpush1.xpose.msra.mxu0 0.0
        %2496 = vmatprep.subr.mxu0 0.0
        %2497 = vmatpush1.xpose.msra.mxu0 0.0
        %2498 = vmatprep.subr.mxu0 0.0
        %2499 = vmatpush1.xpose.msra.mxu0 0.0
        %2500 = vmatprep.subr.mxu0 0.0
        %2501 = vmatpush1.xpose.msra.mxu0 0.0
        %2502 = vmatprep.subr.mxu0 0.0
        %2503 = vmatpush1.xpose.msra.mxu0 0.0
        %2504 = vmatprep.subr.mxu0 0.0
        %2505 = vmatpush1.xpose.msra.mxu0 0.0
        %2506 = vmatprep.subr.mxu0 0.0
        %2507 = vmatpush1.xpose.msra.mxu0 0.0
        %2508 = vmatprep.subr.mxu0 0.0
        %2509 = vmatpush1.xpose.msra.mxu0 0.0
        %2510 = vmatprep.mubr.f32.mxu0 0.0
        %2511 = vmatmul.mubr.f32.gmra.mrb[0].mxu0 %v2436
        %v2512 = vpop.f32.mrb[0].mxu0
        %v2513 = vadd.f32 0.0, %v2512
        %v2514 = vpop.f32.mrb[0].mxu0
        %2515 = vmatprep.mubr.f32.mxu0 0.0
        %2516 = vmatmul.mubr.f32.gmra.mrb[0].mxu0 %v2437
        %v2517 = vpop.f32.mrb[0].mxu0
        %v2518 = vadd.f32 0.0, %v2517
        %v2519 = vpop.f32.mrb[0].mxu0
        %2520 = vmatprep.mubr.f32.mxu0 0.0
        %2521 = vmatmul.mubr.f32.gmra.mrb[0].mxu0 %v2438
        %v2522 = vpop.f32.mrb[0].mxu0
        %v2523 = vadd.f32 0.0, %v2522
        %v2524 = vpop.f32.mrb[0].mxu0
        %2525 = vmatprep.mubr.f32.mxu0 0.0
        %2526 = vmatmul.mubr.f32.gmra.mrb[0].mxu0 %v2439
        %v2527 = vpop.f32.mrb[0].mxu0
        %v2528 = vadd.f32 0.0, %v2527
        %v2529 = vpop.f32.mrb[0].mxu0
        %2530 = vdwg.mxu0
        %v2531 = vadd.f32 %v2440, %v2513
        %v2532 = vadd.f32 %v2441, %v2518
        %v2533 = vadd.f32 %v2442, %v2523
        %v2534 = vadd.f32 %v2443, %v2528
        %vm2535 = vcmask 72704
        %2536 = vst.msk [vmem:[%s4] sm:$0xff] %vm2535, %v2531
        %2537 = vst.msk [vmem:[%s4 + $0x8] sm:$0xff] %vm2535, %v2532
        %2538 = vst.msk [vmem:[%s4 + $0x10] sm:$0xff] %vm2535, %v2533
        %2539 = vst.msk [vmem:[%s4 + $0x18] sm:$0xff] %vm2535, %v2534
        // Predicated region
        $region57: #{tpu_custom_call.1} parent=35 // pred_check
          %p2540 = pneg %p124
        $region58: #{tpu_custom_call.1} parent=35 // pred_check_branch
          %2542 = sbr.rel (%p2540) target = $region60
        $region59: #{tpu_custom_call.1} parent=35 // pred_region
          _
        $region60: #{tpu_custom_call.1} parent=35 // pred_fallthru
          _
        // Predicated region
        $region61: #{tpu_custom_call.1} parent=35 // pred_check
          %p2543 = pneg %p124
        $region62: #{tpu_custom_call.1} parent=35 // pred_check_branch
          %2545 = sbr.rel (%p2543) target = $region64
        $region63: #{tpu_custom_call.1} parent=35 // pred_region
          _
        $region64: #{tpu_custom_call.1} parent=35 // pred_fallthru
          _
      $region36: #{tpu_custom_call.1} parent=5 // pred_fallthru
        _
      %p2546 = scmp.le.s32.totalorder 2, %s12
      // Predicated region
      $region65: #{tpu_custom_call.1} parent=5 // pred_check
        %p2547 = pneg %p2546
      $region66: #{tpu_custom_call.1} parent=5 // pred_check_branch
        %2549 = sbr.rel (%p2547) target = $region68
      $region67: #{tpu_custom_call.1} parent=5 // pred_region
        %s2550 = ssub.s32 %s12, 2
      $region68: #{tpu_custom_call.1} parent=5 // pred_fallthru
        _
    $region6: #{tpu_custom_call.1} parent=1 // loop_footer
      %s16 = sadd.s32 1, %s12
    $region7: #{tpu_custom_call.1} parent=1 // loop_footer_branch
      %11 = sbr.rel target = $region3
    $region8: #{tpu_custom_call.1} parent=1 // loop_exit
      _
    %2551 = vsyncpa [#allocation4], 1
    %s2552 = scalar_lea.sflag [#allocation4], 1
    %2553 = vsyncpa %s2552, 1
    %2554 = vsyncpa [#allocation6], 1

</llo_original>
